<compile_context>
chip_gen: v6e
topology: v6e:2x2x1
jax: 0.10.0
libtpu: 0.0.40
codegen_flags: <defaults>
</compile_context>

<pallas_src>
import functools

import jax
import jax.numpy as jnp
from jax.experimental import pallas as pl
from jax.experimental.pallas import tpu as pltpu


# ---------------------------------------------------------------------------
# Pallas kernel: fused detector (backbone + fused heads + masked CE)
# ---------------------------------------------------------------------------
def _detector_kernel(p_ref, y_ref, w1_ref, b1_ref, wcb_ref, bcb_ref,
                     out_ref, loss_ref, *, num_classes, total_rows):
    tile_m = p_ref.shape[0]
    n_tot = out_ref.shape[-1]            # num_classes + 4

    # Backbone: 3x3 conv as a bf16 matmul over im2col patches, f32 accumulate.
    h = jnp.dot(p_ref[...], w1_ref[...],
                preferred_element_type=jnp.float32) + b1_ref[...]
    h = jnp.maximum(h, 0.0)

    # Fused classification + box head: one wide matmul, one output store.
    out = jnp.dot(h.astype(jnp.bfloat16), wcb_ref[...],
                  preferred_element_type=jnp.float32) + bcb_ref[...]
    out_ref[...] = out

    # --- Cross-entropy over the class columns only (f32, in-kernel one-hot) --
    col = jax.lax.broadcasted_iota(jnp.int32, (tile_m, n_tot), 1)
    cls_mask = col < num_classes
    labels = y_ref[...]                                    # [tile_m, 1] int32
    onehot = (col == labels) & cls_mask

    neg_inf = jnp.float32(-jnp.inf)
    logits_masked = jnp.where(cls_mask, out, neg_inf)
    mx = jnp.max(logits_masked, axis=-1, keepdims=True)    # XLU reduce
    p = jnp.exp(jnp.where(cls_mask, out - mx, neg_inf))    # EUP; exp(-inf)==0
    lse = mx + jnp.log(jnp.sum(p, axis=-1, keepdims=True))
    logp = out - lse

    # Mask rows past the true M on the (possibly padded) last tile, then
    # reduce this tile's contribution to a scalar partial loss.
    row = (pl.program_id(0) * tile_m
           + jax.lax.broadcasted_iota(jnp.int32, (tile_m, n_tot), 0))
    valid = row < total_rows
    ce = -jnp.sum(jnp.where(onehot & valid, logp, 0.0))

    # Lane-dense per-tile partial: keeps the grid axis "parallel" (v7x
    # megacore) and uses unmasked vector stores (tiny: one 4 KiB slab/tile).
    loss_ref[...] = jnp.broadcast_to(ce, loss_ref.shape)


# ---------------------------------------------------------------------------
# Glue: im2col for a 3x3 'SAME' conv on NCHW input (emitted in bf16)
# ---------------------------------------------------------------------------
def _im2col_3x3(x):
    """x: [B, C, H, W] -> patches [B*H*W, C*9]."""
    b, c, h, w = x.shape
    xp = jnp.pad(x, ((0, 0), (0, 0), (1, 1), (1, 1)))
    cols = [xp[:, :, dh:dh + h, dw:dw + w]
            for dh in range(3) for dw in range(3)]
    patches = jnp.stack(cols, axis=2)                      # [B, C, 9, H, W]
    patches = patches.transpose(0, 3, 4, 1, 2)             # [B, H, W, C, 9]
    return patches.reshape(b * h * w, c * 9)


# ---------------------------------------------------------------------------
# Wrapper: CocoDetector forward(x, y)
# ---------------------------------------------------------------------------
@functools.partial(jax.jit, static_argnames=("num_classes", "tile_m"))
def coco_detector_forward(x, y, params, *, num_classes, tile_m=2048):
    """Forward pass of the (concrete) CocoDetector.

    Args:
      x: images, NCHW float32 [B, C, H, W]
      y: ground-truth per-location labels int32 [B, H, W] in [0, num_classes)
      params: dict of weights (see init_params)

    Returns:
      cls_logits [B, H, W, num_classes] (NHWC), box_preds [B, H, W, 4] (NHWC),
      loss scalar.  Outputs stay channels-last to avoid HBM transpose passes.
    """
    b, c, h, w = x.shape
    m = b * h * w
    k = c * 9
    hidden = params["w1"].shape[1]
    n_tot = num_classes + 4

    # bf16 inputs/weights (MXU-native); f32 accumulation inside the kernel.
    patches = _im2col_3x3(x.astype(jnp.bfloat16))          # [M, K] bf16
    labels = y.reshape(m, 1).astype(jnp.int32)             # [M, 1] int32

    w1 = params["w1"].astype(jnp.bfloat16)
    b1 = params["b1"].astype(jnp.float32)
    wcb = jnp.concatenate([params["wc"], params["wb"]],
                          axis=1).astype(jnp.bfloat16)     # [hidden, NC+4]
    bcb = jnp.concatenate([params["bc"], params["bb"]],
                          axis=1).astype(jnp.float32)      # [1, NC+4]

    # Tile sizing: large row tile to amortize the ~0.35us grid-step overhead.
    # Even at tile_m=2048 the double-buffered blocks (patches + output) are a
    # few MiB, far under the default scoped VMEM limit on v5e/v6e/v7x.
    tm = max(8, min(tile_m, m))
    tm = -(-tm // 8) * 8                                   # multiple of 8
    num_tiles = pl.cdiv(m, tm)

    kernel = functools.partial(_detector_kernel,
                               num_classes=num_classes, total_rows=m)

    # Advisory cost hint for XLA's scheduler around the custom call.
    flops = 2 * m * k * hidden + 2 * m * hidden * n_tot
    transcendentals = m * (n_tot + 1)                      # exp rows + log
    bytes_accessed = (m * k * 2 + m * 4 + k * hidden * 2 + hidden * 4
                      + hidden * n_tot * 2 + n_tot * 4
                      + m * n_tot * 4 + num_tiles * 8 * 128 * 4)
    cost = pl.CostEstimate(flops=flops, transcendentals=transcendentals,
                           bytes_accessed=bytes_accessed)

    out_flat, loss_parts = pl.pallas_call(
        kernel,
        out_shape=(
            jax.ShapeDtypeStruct((m, n_tot), jnp.float32),
            jax.ShapeDtypeStruct((num_tiles, 8, 128), jnp.float32),
        ),
        grid_spec=pltpu.PrefetchScalarGridSpec(
            num_scalar_prefetch=0,
            grid=(num_tiles,),
            in_specs=[
                pl.BlockSpec((tm, k), lambda i: (i, 0)),          # patches
                pl.BlockSpec((tm, 1), lambda i: (i, 0)),          # int labels
                pl.BlockSpec((k, hidden), lambda i: (0, 0)),      # w1
                pl.BlockSpec((1, hidden), lambda i: (0, 0)),      # b1
                pl.BlockSpec((hidden, n_tot), lambda i: (0, 0)),  # wc||wb
                pl.BlockSpec((1, n_tot), lambda i: (0, 0)),       # bc||bb
            ],
            out_specs=[
                pl.BlockSpec((tm, n_tot), lambda i: (i, 0)),      # fused heads
                pl.BlockSpec((1, 8, 128), lambda i: (i, 0, 0)),   # loss parts
            ],
        ),
        compiler_params=pltpu.CompilerParams(
            dimension_semantics=("parallel",)),            # tiles independent
        cost_estimate=cost,
    )(patches, labels, w1, b1, wcb, bcb)

    cls_logits = out_flat[:, :num_classes].reshape(b, h, w, num_classes)
    box_preds = out_flat[:, num_classes:].reshape(b, h, w, 4)
    loss = jnp.sum(loss_parts[:, 0, 0]) / jnp.float32(m)
    return cls_logits, box_preds, loss


# ---------------------------------------------------------------------------
# Deterministic parameter initialization (shapes implied by the module)
# ---------------------------------------------------------------------------
def init_params(key, c_in, hidden, num_classes):
    k1, k2, k3 = jax.random.split(key, 3)
    k = c_in * 9
    return {
        "w1": (jax.random.normal(k1, (k, hidden), jnp.float32)
               * (1.0 / jnp.sqrt(k))),
        "b1": jnp.zeros((1, hidden), jnp.float32),
        "wc": (jax.random.normal(k2, (hidden, num_classes), jnp.float32)
               * (1.0 / jnp.sqrt(hidden))),
        "bc": jnp.zeros((1, num_classes), jnp.float32),
        "wb": (jax.random.normal(k3, (hidden, 4), jnp.float32)
               * (1.0 / jnp.sqrt(hidden))),
        "bb": jnp.zeros((1, 4), jnp.float32),
    }


if __name__ == "__main__":
    num_classes = 8
    hidden = 32
    B, C, H, W = 2, 4, 16, 16

    root = jax.random.PRNGKey(0)
    kx, ky, kp = jax.random.split(root, 3)

    x = jax.random.normal(kx, (B, C, H, W), jnp.float32)          # NCHW
    y = jax.random.randint(ky, (B, H, W), 0, num_classes, jnp.int32)
    params = init_params(kp, C, hidden, num_classes)

    cls_logits, box_preds, loss = coco_detector_forward(
        x, y, params, num_classes=num_classes)
    jax.block_until_ready((cls_logits, box_preds, loss))

    assert cls_logits.shape == (B, H, W, num_classes)   # NHWC (channels-last)
    assert box_preds.shape == (B, H, W, 4)
    assert loss.shape == ()
    assert bool(jnp.isfinite(loss))
    print("KERNEL_OK")
</pallas_src>

<mosaic_0001>
module attributes {stable_mosaic.version = 11 : i64} {
  func.func @_detector_kernel(%arg0: i32, %arg1: memref<512x36xbf16, #tpu.memory_space<vmem>>, %arg2: memref<512x1xi32, #tpu.memory_space<vmem>>, %arg3: memref<36x32xbf16, #tpu.memory_space<vmem>>, %arg4: memref<1x32xf32, #tpu.memory_space<vmem>>, %arg5: memref<32x12xbf16, #tpu.memory_space<vmem>>, %arg6: memref<1x12xf32, #tpu.memory_space<vmem>>, %arg7: memref<512x12xf32, #tpu.memory_space<vmem>>, %arg8: memref<1x8x128xf32, #tpu.memory_space<vmem>>) attributes {dimension_semantics = [#tpu.dimension_semantics<parallel>], iteration_bounds = array<i64: 1>, scalar_prefetch = 0 : i64, scratch_operands = 0 : i64, tpu.core_type = #tpu.core_type<tc>, window_params = [{transform_indices = @transform_0, window_bounds = array<i64: 512, 36>}, {transform_indices = @transform_1, window_bounds = array<i64: 512, 1>}, {pipeline_mode = #tpu.pipeline_mode<synchronous>, transform_indices = @transform_2, window_bounds = array<i64: 36, 32>}, {pipeline_mode = #tpu.pipeline_mode<synchronous>, transform_indices = @transform_3, window_bounds = array<i64: 1, 32>}, {pipeline_mode = #tpu.pipeline_mode<synchronous>, transform_indices = @transform_4, window_bounds = array<i64: 32, 12>}, {pipeline_mode = #tpu.pipeline_mode<synchronous>, transform_indices = @transform_5, window_bounds = array<i64: 1, 12>}, {transform_indices = @transform_6, window_bounds = array<i64: 512, 12>}, {transform_indices = @transform_7, window_bounds = array<i64: 1, 8, 128>}]} {
    %c0 = arith.constant 0 : index
    %c0_0 = arith.constant 0 : index
    %0 = vector.load %arg1[%c0, %c0_0] : memref<512x36xbf16, #tpu.memory_space<vmem>>, vector<512x36xbf16>
    %c0_1 = arith.constant 0 : index
    %c0_2 = arith.constant 0 : index
    %1 = vector.load %arg3[%c0_1, %c0_2] : memref<36x32xbf16, #tpu.memory_space<vmem>>, vector<36x32xbf16>
    %cst = arith.constant dense<0.000000e+00> : vector<512x32xf32>
    %2 = tpu.matmul %0, %1, %cst {dimension_numbers = #tpu.dot_dimension_numbers<[1], [0], [0], [1], [0, 0, 1, 1], [], []>} : vector<512x36xbf16>, vector<36x32xbf16>, vector<512x32xf32> -> vector<512x32xf32>
    %c0_3 = arith.constant 0 : index
    %c0_4 = arith.constant 0 : index
    %3 = vector.load %arg4[%c0_3, %c0_4] : memref<1x32xf32, #tpu.memory_space<vmem>>, vector<1x32xf32>
    %4 = vector.broadcast %3 : vector<1x32xf32> to vector<512x32xf32>
    %5 = arith.addf %2, %4 : vector<512x32xf32>
    %cst_5 = arith.constant 0.000000e+00 : f32
    %6 = vector.broadcast %cst_5 : f32 to vector<512x32xf32>
    %7 = arith.maximumf %5, %6 : vector<512x32xf32>
    %8 = arith.truncf %7 : vector<512x32xf32> to vector<512x32xbf16>
    %c0_6 = arith.constant 0 : index
    %c0_7 = arith.constant 0 : index
    %9 = vector.load %arg5[%c0_6, %c0_7] : memref<32x12xbf16, #tpu.memory_space<vmem>>, vector<32x12xbf16>
    %cst_8 = arith.constant dense<0.000000e+00> : vector<512x12xf32>
    %10 = tpu.matmul %8, %9, %cst_8 {dimension_numbers = #tpu.dot_dimension_numbers<[1], [0], [0], [1], [0, 0, 1, 1], [], []>} : vector<512x32xbf16>, vector<32x12xbf16>, vector<512x12xf32> -> vector<512x12xf32>
    %c0_9 = arith.constant 0 : index
    %c0_10 = arith.constant 0 : index
    %11 = vector.load %arg6[%c0_9, %c0_10] : memref<1x12xf32, #tpu.memory_space<vmem>>, vector<1x12xf32>
    %12 = vector.broadcast %11 : vector<1x12xf32> to vector<512x12xf32>
    %13 = arith.addf %10, %12 : vector<512x12xf32>
    %c0_11 = arith.constant 0 : index
    %c0_12 = arith.constant 0 : index
    %14 = vector.load %arg7[%c0_11, %c0_12] : memref<512x12xf32, #tpu.memory_space<vmem>>, vector<512x12xf32>
    tpu.vector_store %arg7[%c0_11, %c0_12], %13 {strides = array<i32>} : memref<512x12xf32, #tpu.memory_space<vmem>>, vector<512x12xf32>,
    %15 = tpu.iota {dimensions = array<i32: 1>} : vector<512x12xi32>
    %c8_i32 = arith.constant 8 : i32
    %16 = vector.broadcast %c8_i32 : i32 to vector<512x12xi32>
    %17 = arith.cmpi slt, %15, %16 : vector<512x12xi32>
    %c0_13 = arith.constant 0 : index
    %c0_14 = arith.constant 0 : index
    %18 = vector.load %arg2[%c0_13, %c0_14] : memref<512x1xi32, #tpu.memory_space<vmem>>, vector<512x1xi32>
    %19 = vector.broadcast %18 : vector<512x1xi32> to vector<512x12xi32>
    %20 = arith.cmpi eq, %15, %19 : vector<512x12xi32>
    %21 = arith.andi %20, %17 : vector<512x12xi1>
    %cst_15 = arith.constant 0xFF800000 : f32
    %22 = vector.broadcast %cst_15 : f32 to vector<512x12xf32>
    %23 = arith.select %17, %13, %22 : vector<512x12xi1>, vector<512x12xf32>
    %cst_16 = arith.constant dense<0xFF800000> : vector<512xf32>
    %24 = vector.multi_reduction <maximumf>, %23, %cst_16 [1] : vector<512x12xf32> to vector<512xf32>
    %25 = vector.shape_cast %24 : vector<512xf32> to vector<512x1xf32>
    %26 = vector.broadcast %25 : vector<512x1xf32> to vector<512x12xf32>
    %27 = arith.subf %13, %26 : vector<512x12xf32>
    %cst_17 = arith.constant 0xFF800000 : f32
    %28 = vector.broadcast %cst_17 : f32 to vector<512x12xf32>
    %29 = arith.select %17, %27, %28 : vector<512x12xi1>, vector<512x12xf32>
    %30 = math.exp %29 : vector<512x12xf32>
    %cst_18 = arith.constant dense<0.000000e+00> : vector<512xf32>
    %31 = vector.multi_reduction <add>, %30, %cst_18 [1] : vector<512x12xf32> to vector<512xf32>
    %32 = vector.shape_cast %31 : vector<512xf32> to vector<512x1xf32>
    %33 = math.log %32 : vector<512x1xf32>
    %34 = arith.addf %25, %33 : vector<512x1xf32>
    %35 = vector.broadcast %34 : vector<512x1xf32> to vector<512x12xf32>
    %36 = arith.subf %13, %35 : vector<512x12xf32>
    %c512_i32 = arith.constant 512 : i32
    %37 = arith.muli %arg0, %c512_i32 : i32
    %38 = tpu.iota {dimensions = array<i32: 0>} : vector<512x12xi32>
    %39 = vector.broadcast %37 : i32 to vector<512x12xi32>
    %40 = arith.addi %39, %38 : vector<512x12xi32>
    %c512_i32_19 = arith.constant 512 : i32
    %41 = vector.broadcast %c512_i32_19 : i32 to vector<512x12xi32>
    %42 = arith.cmpi slt, %40, %41 : vector<512x12xi32>
    %43 = arith.andi %21, %42 : vector<512x12xi1>
    %cst_20 = arith.constant 0.000000e+00 : f32
    %44 = vector.broadcast %cst_20 : f32 to vector<512x12xf32>
    %45 = arith.select %43, %36, %44 : vector<512x12xi1>, vector<512x12xf32>
    %46 = vector.shape_cast %45 : vector<512x12xf32> to vector<1x512x12xf32>
    %cst_21 = arith.constant dense<0.000000e+00> : vector<1xf32>
    %47 = vector.multi_reduction <add>, %46, %cst_21 [1, 2] : vector<1x512x12xf32> to vector<1xf32>
    %48 = vector.shape_cast %47 : vector<1xf32> to vector<1x1x1xf32>
    %49 = vector.extract %48[0, 0, 0] : f32 from vector<1x1x1xf32>
    %cst_22 = arith.constant 0.000000e+00 : f32
    %50 = arith.subf %cst_22, %49 : f32
    %51 = vector.broadcast %50 : f32 to vector<1x8x128xf32>
    %c0_23 = arith.constant 0 : index
    %c0_24 = arith.constant 0 : index
    %c0_25 = arith.constant 0 : index
    %52 = vector.load %arg8[%c0_23, %c0_24, %c0_25] : memref<1x8x128xf32, #tpu.memory_space<vmem>>, vector<1x8x128xf32>
    tpu.vector_store %arg8[%c0_23, %c0_24, %c0_25], %51 {strides = array<i32>} : memref<1x8x128xf32, #tpu.memory_space<vmem>>, vector<1x8x128xf32>,
    return
  }
  func.func @transform_0(%arg0: i32) -> (i32, i32) {
    %c0_i32 = arith.constant 0 : i32
    %c0_i32_0 = arith.constant 0 : i32
    return %arg0, %c0_i32 : i32, i32
  }
  func.func @transform_1(%arg0: i32) -> (i32, i32) {
    %c0_i32 = arith.constant 0 : i32
    %c0_i32_0 = arith.constant 0 : i32
    return %arg0, %c0_i32 : i32, i32
  }
  func.func @transform_2(%arg0: i32) -> (i32, i32) {
    %c0_i32 = arith.constant 0 : i32
    %c0_i32_0 = arith.constant 0 : i32
    %c0_i32_1 = arith.constant 0 : i32
    return %c0_i32, %c0_i32_0 : i32, i32
  }
  func.func @transform_3(%arg0: i32) -> (i32, i32) {
    %c0_i32 = arith.constant 0 : i32
    %c0_i32_0 = arith.constant 0 : i32
    %c0_i32_1 = arith.constant 0 : i32
    return %c0_i32, %c0_i32_0 : i32, i32
  }
  func.func @transform_4(%arg0: i32) -> (i32, i32) {
    %c0_i32 = arith.constant 0 : i32
    %c0_i32_0 = arith.constant 0 : i32
    %c0_i32_1 = arith.constant 0 : i32
    return %c0_i32, %c0_i32_0 : i32, i32
  }
  func.func @transform_5(%arg0: i32) -> (i32, i32) {
    %c0_i32 = arith.constant 0 : i32
    %c0_i32_0 = arith.constant 0 : i32
    %c0_i32_1 = arith.constant 0 : i32
    return %c0_i32, %c0_i32_0 : i32, i32
  }
  func.func @transform_6(%arg0: i32) -> (i32, i32) {
    %c0_i32 = arith.constant 0 : i32
    %c0_i32_0 = arith.constant 0 : i32
    return %arg0, %c0_i32 : i32, i32
  }
  func.func @transform_7(%arg0: i32) -> (i32, i32, i32) {
    %c0_i32 = arith.constant 0 : i32
    %c0_i32_0 = arith.constant 0 : i32
    %c0_i32_1 = arith.constant 0 : i32
    return %arg0, %c0_i32, %c0_i32_0 : i32, i32, i32
  }
}

</mosaic_0001>

<llo_original>
// kernel: coco_detector_forward.1
$region0: #{coco_detector_forward.1}
  #allocation0 [shape = 'u32[]', space=smem, size = 0x4, offset = 0x4, fixed_abs, tag = 'smem constant byte address 0x4 - core index']
  #allocation1 [shape = 'u32[144,128]{1,0:T(1,128)}', space=vmem, size = 0x12000, scoped, tag = 'internal scratch']
  %s0 = inlined_call_operand.vmem [shape: bf16[512,36], index: 0, kind: input, shape index: {}]
  %s1 = inlined_call_operand.vmem [shape: s32[512,1], index: 1, kind: input, shape index: {}]
  %s2 = inlined_call_operand.vmem [shape: bf16[36,32], index: 2, kind: input, shape index: {}]
  %s3 = inlined_call_operand.vmem [shape: f32[1,32], index: 3, kind: input, shape index: {}]
  %s4 = inlined_call_operand.vmem [shape: bf16[32,12], index: 4, kind: input, shape index: {}]
  %s5 = inlined_call_operand.vmem [shape: f32[1,12], index: 5, kind: input, shape index: {}]
  %s6 = inlined_call_operand.vmem [shape: f32[512,12], index: 6, kind: output, shape index: {0}]
  %s7 = inlined_call_operand.vmem [shape: f32[1,8,128], index: 7, kind: output, shape index: {1}]
  %8 = xla_tuple %s6, %s7
  %s9 = sld [smem:[#allocation0]]
  $region42: #{coco_detector_forward.1} parent=0
    _
  %s11 = ssub.s32 1, %s9
  %s12 = scalar_select 0, %s11, %s9
  // Predicated region
  $region2: #{coco_detector_forward.1} parent=0 // pred_check
    _
  $region3: #{coco_detector_forward.1} parent=0 // pred_check_branch
    %14 = sbr.rel (0) target = $region5
  $region4: #{coco_detector_forward.1} parent=0 // pred_region
    _
  $region5: #{coco_detector_forward.1} parent=0 // pred_fallthru
    _
  // Predicated region
  $region6: #{coco_detector_forward.1} parent=0 // pred_check
    _
  $region7: #{coco_detector_forward.1} parent=0 // pred_check_branch
    %16 = sbr.rel (0) target = $region9
  $region8: #{coco_detector_forward.1} parent=0 // pred_region
    _
  $region9: #{coco_detector_forward.1} parent=0 // pred_fallthru
    _
  // Predicated region
  $region10: #{coco_detector_forward.1} parent=0 // pred_check
    _
  $region11: #{coco_detector_forward.1} parent=0 // pred_check_branch
    %18 = sbr.rel (0) target = $region13
  $region12: #{coco_detector_forward.1} parent=0 // pred_region
    _
  $region13: #{coco_detector_forward.1} parent=0 // pred_fallthru
    _
  // Predicated region
  $region14: #{coco_detector_forward.1} parent=0 // pred_check
    _
  $region15: #{coco_detector_forward.1} parent=0 // pred_check_branch
    %20 = sbr.rel (0) target = $region17
  $region16: #{coco_detector_forward.1} parent=0 // pred_region
    _
  $region17: #{coco_detector_forward.1} parent=0 // pred_fallthru
    _
  // Predicated region
  $region18: #{coco_detector_forward.1} parent=0 // pred_check
    _
  $region19: #{coco_detector_forward.1} parent=0 // pred_check_branch
    %22 = sbr.rel (0) target = $region21
  $region20: #{coco_detector_forward.1} parent=0 // pred_region
    _
  $region21: #{coco_detector_forward.1} parent=0 // pred_fallthru
    _
  // Predicated region
  $region22: #{coco_detector_forward.1} parent=0 // pred_check
    _
  $region23: #{coco_detector_forward.1} parent=0 // pred_check_branch
    %24 = sbr.rel (0) target = $region25
  $region24: #{coco_detector_forward.1} parent=0 // pred_region
    _
  $region25: #{coco_detector_forward.1} parent=0 // pred_fallthru
    _
  %v26 = vld [vmem:[%s0] sm:$0xf]
  %v27 = vld [vmem:[%s0 + $0x4] sm:$0xf]
  %v28 = vld [vmem:[%s0 + $0x8] sm:$0xf]
  %v29 = vld [vmem:[%s0 + $0xc] sm:$0xf]
  %v30 = vld [vmem:[%s0 + $0x10] sm:$0xf]
  %v31 = vld [vmem:[%s0 + $0x14] sm:$0xf]
  %v32 = vld [vmem:[%s0 + $0x18] sm:$0xf]
  %v33 = vld [vmem:[%s0 + $0x1c] sm:$0xf]
  %v34 = vld [vmem:[%s0 + $0x20] sm:$0xf]
  %v35 = vld [vmem:[%s0 + $0x24] sm:$0xf]
  %v36 = vld [vmem:[%s0 + $0x28] sm:$0xf]
  %v37 = vld [vmem:[%s0 + $0x2c] sm:$0xf]
  %v38 = vld [vmem:[%s0 + $0x30] sm:$0xf]
  %v39 = vld [vmem:[%s0 + $0x34] sm:$0xf]
  %v40 = vld [vmem:[%s0 + $0x38] sm:$0xf]
  %v41 = vld [vmem:[%s0 + $0x3c] sm:$0xf]
  %v42 = vld [vmem:[%s0 + $0x40] sm:$0xf]
  %v43 = vld [vmem:[%s0 + $0x44] sm:$0xf]
  %v44 = vld [vmem:[%s0 + $0x48] sm:$0xf]
  %v45 = vld [vmem:[%s0 + $0x4c] sm:$0xf]
  %v46 = vld [vmem:[%s0 + $0x50] sm:$0xf]
  %v47 = vld [vmem:[%s0 + $0x54] sm:$0xf]
  %v48 = vld [vmem:[%s0 + $0x58] sm:$0xf]
  %v49 = vld [vmem:[%s0 + $0x5c] sm:$0xf]
  %v50 = vld [vmem:[%s0 + $0x60] sm:$0xf]
  %v51 = vld [vmem:[%s0 + $0x64] sm:$0xf]
  %v52 = vld [vmem:[%s0 + $0x68] sm:$0xf]
  %v53 = vld [vmem:[%s0 + $0x6c] sm:$0xf]
  %v54 = vld [vmem:[%s0 + $0x70] sm:$0xf]
  %v55 = vld [vmem:[%s0 + $0x74] sm:$0xf]
  %v56 = vld [vmem:[%s0 + $0x78] sm:$0xf]
  %v57 = vld [vmem:[%s0 + $0x7c] sm:$0xf]
  %v58 = vld [vmem:[%s0 + $0x80] sm:$0xf]
  %v59 = vld [vmem:[%s0 + $0x84] sm:$0xf]
  %v60 = vld [vmem:[%s0 + $0x88] sm:$0xf]
  %v61 = vld [vmem:[%s0 + $0x8c] sm:$0xf]
  %v62 = vld [vmem:[%s0 + $0x90] sm:$0xf]
  %v63 = vld [vmem:[%s0 + $0x94] sm:$0xf]
  %v64 = vld [vmem:[%s0 + $0x98] sm:$0xf]
  %v65 = vld [vmem:[%s0 + $0x9c] sm:$0xf]
  %v66 = vld [vmem:[%s0 + $0xa0] sm:$0xf]
  %v67 = vld [vmem:[%s0 + $0xa4] sm:$0xf]
  %v68 = vld [vmem:[%s0 + $0xa8] sm:$0xf]
  %v69 = vld [vmem:[%s0 + $0xac] sm:$0xf]
  %v70 = vld [vmem:[%s0 + $0xb0] sm:$0xf]
  %v71 = vld [vmem:[%s0 + $0xb4] sm:$0xf]
  %v72 = vld [vmem:[%s0 + $0xb8] sm:$0xf]
  %v73 = vld [vmem:[%s0 + $0xbc] sm:$0xf]
  %v74 = vld [vmem:[%s0 + $0xc0] sm:$0xf]
  %v75 = vld [vmem:[%s0 + $0xc4] sm:$0xf]
  %v76 = vld [vmem:[%s0 + $0xc8] sm:$0xf]
  %v77 = vld [vmem:[%s0 + $0xcc] sm:$0xf]
  %v78 = vld [vmem:[%s0 + $0xd0] sm:$0xf]
  %v79 = vld [vmem:[%s0 + $0xd4] sm:$0xf]
  %v80 = vld [vmem:[%s0 + $0xd8] sm:$0xf]
  %v81 = vld [vmem:[%s0 + $0xdc] sm:$0xf]
  %v82 = vld [vmem:[%s0 + $0xe0] sm:$0xf]
  %v83 = vld [vmem:[%s0 + $0xe4] sm:$0xf]
  %v84 = vld [vmem:[%s0 + $0xe8] sm:$0xf]
  %v85 = vld [vmem:[%s0 + $0xec] sm:$0xf]
  %v86 = vld [vmem:[%s0 + $0xf0] sm:$0xf]
  %v87 = vld [vmem:[%s0 + $0xf4] sm:$0xf]
  %v88 = vld [vmem:[%s0 + $0xf8] sm:$0xf]
  %v89 = vld [vmem:[%s0 + $0xfc] sm:$0xf]
  %v90 = vld [vmem:[%s2] sm:$0xf]
  %v91 = vld [vmem:[%s2 + $0x4] sm:$0xf]
  %v92 = vld [vmem:[%s2 + $0x8] sm:$0xf]
  %v93 = vld [vmem:[%s2 + $0xc] sm:$0xf]
  %v94 = vld [vmem:[%s2 + $0x10] sm:$0x3]
  %v95 = vld [vmem:[%s3] sm:$0x1]
  %v97 = vlaneseq
  %v98 = vshrl.u32 %v97, 7
  %v99 = vsub.s32 0, %v98
  %v100 = vrot.slane %v95, %v99
  %v166 = vunpack.c.l.b16 %v26
  %v167 = vunpack.c.l.b16 %v27
  %v168 = vunpack.c.l.b16 %v28
  %v169 = vunpack.c.l.b16 %v29
  %v170 = vunpack.c.l.b16 %v30
  %v171 = vunpack.c.l.b16 %v31
  %v172 = vunpack.c.l.b16 %v32
  %v173 = vunpack.c.l.b16 %v33
  %v174 = vunpack.c.l.b16 %v34
  %v175 = vunpack.c.l.b16 %v35
  %v176 = vunpack.c.l.b16 %v36
  %v177 = vunpack.c.l.b16 %v37
  %v178 = vunpack.c.l.b16 %v38
  %v179 = vunpack.c.l.b16 %v39
  %v180 = vunpack.c.l.b16 %v40
  %v181 = vunpack.c.l.b16 %v41
  %v182 = vunpack.c.l.b16 %v42
  %v183 = vunpack.c.l.b16 %v43
  %v184 = vunpack.c.l.b16 %v44
  %v185 = vunpack.c.l.b16 %v45
  %v186 = vunpack.c.l.b16 %v46
  %v187 = vunpack.c.l.b16 %v47
  %v188 = vunpack.c.l.b16 %v48
  %v189 = vunpack.c.l.b16 %v49
  %v190 = vunpack.c.l.b16 %v50
  %v191 = vunpack.c.l.b16 %v51
  %v192 = vunpack.c.l.b16 %v52
  %v193 = vunpack.c.l.b16 %v53
  %v194 = vunpack.c.l.b16 %v54
  %v195 = vunpack.c.l.b16 %v55
  %v196 = vunpack.c.l.b16 %v56
  %v197 = vunpack.c.l.b16 %v57
  %v198 = vunpack.c.l.b16 %v58
  %v199 = vunpack.c.l.b16 %v59
  %v200 = vunpack.c.l.b16 %v60
  %v201 = vunpack.c.l.b16 %v61
  %v202 = vunpack.c.l.b16 %v62
  %v203 = vunpack.c.l.b16 %v63
  %v204 = vunpack.c.l.b16 %v64
  %v205 = vunpack.c.l.b16 %v65
  %v206 = vunpack.c.l.b16 %v66
  %v207 = vunpack.c.l.b16 %v67
  %v208 = vunpack.c.l.b16 %v68
  %v209 = vunpack.c.l.b16 %v69
  %v210 = vunpack.c.l.b16 %v70
  %v211 = vunpack.c.l.b16 %v71
  %v212 = vunpack.c.l.b16 %v72
  %v213 = vunpack.c.l.b16 %v73
  %v214 = vunpack.c.l.b16 %v74
  %v215 = vunpack.c.l.b16 %v75
  %v216 = vunpack.c.l.b16 %v76
  %v217 = vunpack.c.l.b16 %v77
  %v218 = vunpack.c.l.b16 %v78
  %v219 = vunpack.c.l.b16 %v79
  %v220 = vunpack.c.l.b16 %v80
  %v221 = vunpack.c.l.b16 %v81
  %v222 = vunpack.c.l.b16 %v82
  %v223 = vunpack.c.l.b16 %v83
  %v224 = vunpack.c.l.b16 %v84
  %v225 = vunpack.c.l.b16 %v85
  %v226 = vunpack.c.l.b16 %v86
  %v227 = vunpack.c.l.b16 %v87
  %v228 = vunpack.c.l.b16 %v88
  %v229 = vunpack.c.l.b16 %v89
  %v230 = vpack.c.b16 %v167, %v166
  %v231 = vpack.c.b16 %v169, %v168
  %v232 = vpack.c.b16 %v171, %v170
  %v233 = vpack.c.b16 %v173, %v172
  %v234 = vpack.c.b16 %v175, %v174
  %v235 = vpack.c.b16 %v177, %v176
  %v236 = vpack.c.b16 %v179, %v178
  %v237 = vpack.c.b16 %v181, %v180
  %v238 = vpack.c.b16 %v183, %v182
  %v239 = vpack.c.b16 %v185, %v184
  %v240 = vpack.c.b16 %v187, %v186
  %v241 = vpack.c.b16 %v189, %v188
  %v242 = vpack.c.b16 %v191, %v190
  %v243 = vpack.c.b16 %v193, %v192
  %v244 = vpack.c.b16 %v195, %v194
  %v245 = vpack.c.b16 %v197, %v196
  %v246 = vpack.c.b16 %v199, %v198
  %v247 = vpack.c.b16 %v201, %v200
  %v248 = vpack.c.b16 %v203, %v202
  %v249 = vpack.c.b16 %v205, %v204
  %v250 = vpack.c.b16 %v207, %v206
  %v251 = vpack.c.b16 %v209, %v208
  %v252 = vpack.c.b16 %v211, %v210
  %v253 = vpack.c.b16 %v213, %v212
  %v254 = vpack.c.b16 %v215, %v214
  %v255 = vpack.c.b16 %v217, %v216
  %v256 = vpack.c.b16 %v219, %v218
  %v257 = vpack.c.b16 %v221, %v220
  %v258 = vpack.c.b16 %v223, %v222
  %v259 = vpack.c.b16 %v225, %v224
  %v260 = vpack.c.b16 %v227, %v226
  %v261 = vpack.c.b16 %v229, %v228
  %v267 = vunpack.c.l.b16 %v90
  %v268 = vunpack.c.l.b16 %v91
  %v269 = vunpack.c.l.b16 %v92
  %v270 = vunpack.c.l.b16 %v93
  %v271 = vunpack.c.l.b16 %v94
  %v272 = vpack.c.b16 %v268, %v267
  %v273 = vpack.c.b16 %v270, %v269
  %v274 = vpack.c.b16 %v271, %v271
  %vm277 = vcmask 293888
  %v279 = vsel %vm277, %v230, 0
  %v282 = vsel %vm277, %v231, 0
  %v285 = vsel %vm277, %v232, 0
  %v288 = vsel %vm277, %v233, 0
  %v291 = vsel %vm277, %v234, 0
  %v294 = vsel %vm277, %v235, 0
  %v297 = vsel %vm277, %v236, 0
  %v300 = vsel %vm277, %v237, 0
  %v303 = vsel %vm277, %v238, 0
  %v306 = vsel %vm277, %v239, 0
  %v309 = vsel %vm277, %v240, 0
  %v312 = vsel %vm277, %v241, 0
  %v315 = vsel %vm277, %v242, 0
  %v318 = vsel %vm277, %v243, 0
  %v321 = vsel %vm277, %v244, 0
  %v324 = vsel %vm277, %v245, 0
  %v327 = vsel %vm277, %v246, 0
  %v330 = vsel %vm277, %v247, 0
  %v333 = vsel %vm277, %v248, 0
  %v336 = vsel %vm277, %v249, 0
  %v339 = vsel %vm277, %v250, 0
  %v342 = vsel %vm277, %v251, 0
  %v345 = vsel %vm277, %v252, 0
  %v348 = vsel %vm277, %v253, 0
  %v351 = vsel %vm277, %v254, 0
  %v354 = vsel %vm277, %v255, 0
  %v357 = vsel %vm277, %v256, 0
  %v360 = vsel %vm277, %v257, 0
  %v363 = vsel %vm277, %v258, 0
  %v366 = vsel %vm277, %v259, 0
  %v369 = vsel %vm277, %v260, 0
  %v372 = vsel %vm277, %v261, 0
  %vm374 = vcmask 1041408
  %v376 = vsel %vm374, %v274, 0
  %378 = vmatprep.subr.bf16.mxu0 0
  %379 = vmatpush1.bf16.msra.mxu0 0
  %380 = vmatprep.subr.bf16.mxu0 0
  %381 = vmatpush1.bf16.msra.mxu0 0
  %382 = vmatprep.subr.bf16.mxu0 0
  %383 = vmatpush1.bf16.msra.mxu0 0
  %384 = vmatprep.subr.bf16.mxu0 0
  %385 = vmatpush1.bf16.msra.mxu0 0
  %386 = vmatprep.subr.bf16.mxu0 0
  %387 = vmatpush1.bf16.msra.mxu0 0
  %388 = vmatprep.subr.bf16.mxu0 0
  %389 = vmatpush1.bf16.msra.mxu0 %v376
  %390 = vmatprep.subr.bf16.mxu0 0
  %391 = vmatpush1.bf16.msra.mxu0 %v273
  %392 = vmatprep.subr.bf16.mxu0 0
  %393 = vmatpush1.bf16.msra.mxu0 %v272
  %394 = vmatprep.subr.bf16.mxu0 0
  %395 = vmatpush2.bf16.msra.mxu0 0
  %396 = vmatprep.subr.bf16.mxu0 0
  %397 = vmatpush2.bf16.msra.mxu0 0
  %398 = vmatprep.subr.bf16.mxu0 0
  %399 = vmatpush2.bf16.msra.mxu0 0
  %400 = vmatprep.subr.bf16.mxu0 0
  %401 = vmatpush2.bf16.msra.mxu0 0
  %402 = vmatprep.subr.bf16.mxu0 0
  %403 = vmatpush2.bf16.msra.mxu0 0
  %404 = vmatprep.subr.bf16.mxu0 0
  %405 = vmatpush2.bf16.msra.mxu0 0
  %406 = vmatprep.subr.bf16.mxu0 0
  %407 = vmatpush2.bf16.msra.mxu0 0
  %408 = vmatprep.subr.bf16.mxu0 0
  %409 = vmatpush2.bf16.msra.mxu0 0
  %410 = vmatprep.mubr.bf16.mxu0 0
  %411 = vmatmul.mubr.bf16.gmra.mxu0 %v279
  %v412 = vpop.f32.mrf.mxu0
  %v413 = vadd.f32 %v100, %v412
  %v414 = vpop.f32.mrf.mxu0
  %v415 = vpop.f32.mrf.mxu0
  %v416 = vadd.f32 %v100, %v415
  %v417 = vpop.f32.mrf.mxu0
  %418 = vmatprep.mubr.bf16.mxu0 0
  %419 = vmatmul.mubr.bf16.gmra.mxu0 %v282
  %v420 = vpop.f32.mrf.mxu0
  %v421 = vadd.f32 %v100, %v420
  %v422 = vpop.f32.mrf.mxu0
  %v423 = vpop.f32.mrf.mxu0
  %v424 = vadd.f32 %v100, %v423
  %v425 = vpop.f32.mrf.mxu0
  %426 = vmatprep.mubr.bf16.mxu0 0
  %427 = vmatmul.mubr.bf16.gmra.mxu0 %v285
  %v428 = vpop.f32.mrf.mxu0
  %v429 = vadd.f32 %v100, %v428
  %v430 = vpop.f32.mrf.mxu0
  %v431 = vpop.f32.mrf.mxu0
  %v432 = vadd.f32 %v100, %v431
  %v433 = vpop.f32.mrf.mxu0
  %434 = vmatprep.mubr.bf16.mxu0 0
  %435 = vmatmul.mubr.bf16.gmra.mxu0 %v288
  %v436 = vpop.f32.mrf.mxu0
  %v437 = vadd.f32 %v100, %v436
  %v438 = vpop.f32.mrf.mxu0
  %v439 = vpop.f32.mrf.mxu0
  %v440 = vadd.f32 %v100, %v439
  %v441 = vpop.f32.mrf.mxu0
  %442 = vmatprep.mubr.bf16.mxu0 0
  %443 = vmatmul.mubr.bf16.gmra.mxu0 %v291
  %v444 = vpop.f32.mrf.mxu0
  %v445 = vadd.f32 %v100, %v444
  %v446 = vpop.f32.mrf.mxu0
  %v447 = vpop.f32.mrf.mxu0
  %v448 = vadd.f32 %v100, %v447
  %v449 = vpop.f32.mrf.mxu0
  %450 = vmatprep.mubr.bf16.mxu0 0
  %451 = vmatmul.mubr.bf16.gmra.mxu0 %v294
  %v452 = vpop.f32.mrf.mxu0
  %v453 = vadd.f32 %v100, %v452
  %v454 = vpop.f32.mrf.mxu0
  %v455 = vpop.f32.mrf.mxu0
  %v456 = vadd.f32 %v100, %v455
  %v457 = vpop.f32.mrf.mxu0
  %458 = vmatprep.mubr.bf16.mxu0 0
  %459 = vmatmul.mubr.bf16.gmra.mxu0 %v297
  %v460 = vpop.f32.mrf.mxu0
  %v461 = vadd.f32 %v100, %v460
  %v462 = vpop.f32.mrf.mxu0
  %v463 = vpop.f32.mrf.mxu0
  %v464 = vadd.f32 %v100, %v463
  %v465 = vpop.f32.mrf.mxu0
  %466 = vmatprep.mubr.bf16.mxu0 0
  %467 = vmatmul.mubr.bf16.gmra.mxu0 %v300
  %v468 = vpop.f32.mrf.mxu0
  %v469 = vadd.f32 %v100, %v468
  %v470 = vpop.f32.mrf.mxu0
  %v471 = vpop.f32.mrf.mxu0
  %v472 = vadd.f32 %v100, %v471
  %v473 = vpop.f32.mrf.mxu0
  %474 = vmatprep.mubr.bf16.mxu0 0
  %475 = vmatmul.mubr.bf16.gmra.mxu0 %v303
  %v476 = vpop.f32.mrf.mxu0
  %v477 = vadd.f32 %v100, %v476
  %v478 = vpop.f32.mrf.mxu0
  %v479 = vpop.f32.mrf.mxu0
  %v480 = vadd.f32 %v100, %v479
  %v481 = vpop.f32.mrf.mxu0
  %482 = vmatprep.mubr.bf16.mxu0 0
  %483 = vmatmul.mubr.bf16.gmra.mxu0 %v306
  %v484 = vpop.f32.mrf.mxu0
  %v485 = vadd.f32 %v100, %v484
  %v486 = vpop.f32.mrf.mxu0
  %v487 = vpop.f32.mrf.mxu0
  %v488 = vadd.f32 %v100, %v487
  %v489 = vpop.f32.mrf.mxu0
  %490 = vmatprep.mubr.bf16.mxu0 0
  %491 = vmatmul.mubr.bf16.gmra.mxu0 %v309
  %v492 = vpop.f32.mrf.mxu0
  %v493 = vadd.f32 %v100, %v492
  %v494 = vpop.f32.mrf.mxu0
  %v495 = vpop.f32.mrf.mxu0
  %v496 = vadd.f32 %v100, %v495
  %v497 = vpop.f32.mrf.mxu0
  %498 = vmatprep.mubr.bf16.mxu0 0
  %499 = vmatmul.mubr.bf16.gmra.mxu0 %v312
  %v500 = vpop.f32.mrf.mxu0
  %v501 = vadd.f32 %v100, %v500
  %v502 = vpop.f32.mrf.mxu0
  %v503 = vpop.f32.mrf.mxu0
  %v504 = vadd.f32 %v100, %v503
  %v505 = vpop.f32.mrf.mxu0
  %506 = vmatprep.mubr.bf16.mxu0 0
  %507 = vmatmul.mubr.bf16.gmra.mxu0 %v315
  %v508 = vpop.f32.mrf.mxu0
  %v509 = vadd.f32 %v100, %v508
  %v510 = vpop.f32.mrf.mxu0
  %v511 = vpop.f32.mrf.mxu0
  %v512 = vadd.f32 %v100, %v511
  %v513 = vpop.f32.mrf.mxu0
  %514 = vmatprep.mubr.bf16.mxu0 0
  %515 = vmatmul.mubr.bf16.gmra.mxu0 %v318
  %v516 = vpop.f32.mrf.mxu0
  %v517 = vadd.f32 %v100, %v516
  %v518 = vpop.f32.mrf.mxu0
  %v519 = vpop.f32.mrf.mxu0
  %v520 = vadd.f32 %v100, %v519
  %v521 = vpop.f32.mrf.mxu0
  %522 = vmatprep.mubr.bf16.mxu0 0
  %523 = vmatmul.mubr.bf16.gmra.mxu0 %v321
  %v524 = vpop.f32.mrf.mxu0
  %v525 = vadd.f32 %v100, %v524
  %v526 = vpop.f32.mrf.mxu0
  %v527 = vpop.f32.mrf.mxu0
  %v528 = vadd.f32 %v100, %v527
  %v529 = vpop.f32.mrf.mxu0
  %530 = vmatprep.mubr.bf16.mxu0 0
  %531 = vmatmul.mubr.bf16.gmra.mxu0 %v324
  %v532 = vpop.f32.mrf.mxu0
  %v533 = vadd.f32 %v100, %v532
  %v534 = vpop.f32.mrf.mxu0
  %v535 = vpop.f32.mrf.mxu0
  %v536 = vadd.f32 %v100, %v535
  %v537 = vpop.f32.mrf.mxu0
  %538 = vmatprep.mubr.bf16.mxu0 0
  %539 = vmatmul.mubr.bf16.gmra.mxu0 %v327
  %v540 = vpop.f32.mrf.mxu0
  %v541 = vadd.f32 %v100, %v540
  %v542 = vpop.f32.mrf.mxu0
  %v543 = vpop.f32.mrf.mxu0
  %v544 = vadd.f32 %v100, %v543
  %v545 = vpop.f32.mrf.mxu0
  %546 = vmatprep.mubr.bf16.mxu0 0
  %547 = vmatmul.mubr.bf16.gmra.mxu0 %v330
  %v548 = vpop.f32.mrf.mxu0
  %v549 = vadd.f32 %v100, %v548
  %v550 = vpop.f32.mrf.mxu0
  %v551 = vpop.f32.mrf.mxu0
  %v552 = vadd.f32 %v100, %v551
  %v553 = vpop.f32.mrf.mxu0
  %554 = vmatprep.mubr.bf16.mxu0 0
  %555 = vmatmul.mubr.bf16.gmra.mxu0 %v333
  %v556 = vpop.f32.mrf.mxu0
  %v557 = vadd.f32 %v100, %v556
  %v558 = vpop.f32.mrf.mxu0
  %v559 = vpop.f32.mrf.mxu0
  %v560 = vadd.f32 %v100, %v559
  %v561 = vpop.f32.mrf.mxu0
  %562 = vmatprep.mubr.bf16.mxu0 0
  %563 = vmatmul.mubr.bf16.gmra.mxu0 %v336
  %v564 = vpop.f32.mrf.mxu0
  %v565 = vadd.f32 %v100, %v564
  %v566 = vpop.f32.mrf.mxu0
  %v567 = vpop.f32.mrf.mxu0
  %v568 = vadd.f32 %v100, %v567
  %v569 = vpop.f32.mrf.mxu0
  %570 = vmatprep.mubr.bf16.mxu0 0
  %571 = vmatmul.mubr.bf16.gmra.mxu0 %v339
  %v572 = vpop.f32.mrf.mxu0
  %v573 = vadd.f32 %v100, %v572
  %v574 = vpop.f32.mrf.mxu0
  %v575 = vpop.f32.mrf.mxu0
  %v576 = vadd.f32 %v100, %v575
  %v577 = vpop.f32.mrf.mxu0
  %578 = vmatprep.mubr.bf16.mxu0 0
  %579 = vmatmul.mubr.bf16.gmra.mxu0 %v342
  %v580 = vpop.f32.mrf.mxu0
  %v581 = vadd.f32 %v100, %v580
  %v582 = vpop.f32.mrf.mxu0
  %v583 = vpop.f32.mrf.mxu0
  %v584 = vadd.f32 %v100, %v583
  %v585 = vpop.f32.mrf.mxu0
  %586 = vmatprep.mubr.bf16.mxu0 0
  %587 = vmatmul.mubr.bf16.gmra.mxu0 %v345
  %v588 = vpop.f32.mrf.mxu0
  %v589 = vadd.f32 %v100, %v588
  %v590 = vpop.f32.mrf.mxu0
  %v591 = vpop.f32.mrf.mxu0
  %v592 = vadd.f32 %v100, %v591
  %v593 = vpop.f32.mrf.mxu0
  %594 = vmatprep.mubr.bf16.mxu0 0
  %595 = vmatmul.mubr.bf16.gmra.mxu0 %v348
  %v596 = vpop.f32.mrf.mxu0
  %v597 = vadd.f32 %v100, %v596
  %v598 = vpop.f32.mrf.mxu0
  %v599 = vpop.f32.mrf.mxu0
  %v600 = vadd.f32 %v100, %v599
  %v601 = vpop.f32.mrf.mxu0
  %602 = vmatprep.mubr.bf16.mxu0 0
  %603 = vmatmul.mubr.bf16.gmra.mxu0 %v351
  %v604 = vpop.f32.mrf.mxu0
  %v605 = vadd.f32 %v100, %v604
  %v606 = vpop.f32.mrf.mxu0
  %v607 = vpop.f32.mrf.mxu0
  %v608 = vadd.f32 %v100, %v607
  %v609 = vpop.f32.mrf.mxu0
  %610 = vmatprep.mubr.bf16.mxu0 0
  %611 = vmatmul.mubr.bf16.gmra.mxu0 %v354
  %v612 = vpop.f32.mrf.mxu0
  %v613 = vadd.f32 %v100, %v612
  %v614 = vpop.f32.mrf.mxu0
  %v615 = vpop.f32.mrf.mxu0
  %v616 = vadd.f32 %v100, %v615
  %v617 = vpop.f32.mrf.mxu0
  %618 = vmatprep.mubr.bf16.mxu0 0
  %619 = vmatmul.mubr.bf16.gmra.mxu0 %v357
  %v620 = vpop.f32.mrf.mxu0
  %v621 = vadd.f32 %v100, %v620
  %v622 = vpop.f32.mrf.mxu0
  %v623 = vpop.f32.mrf.mxu0
  %v624 = vadd.f32 %v100, %v623
  %v625 = vpop.f32.mrf.mxu0
  %626 = vmatprep.mubr.bf16.mxu0 0
  %627 = vmatmul.mubr.bf16.gmra.mxu0 %v360
  %v628 = vpop.f32.mrf.mxu0
  %v629 = vadd.f32 %v100, %v628
  %v630 = vpop.f32.mrf.mxu0
  %v631 = vpop.f32.mrf.mxu0
  %v632 = vadd.f32 %v100, %v631
  %v633 = vpop.f32.mrf.mxu0
  %634 = vmatprep.mubr.bf16.mxu0 0
  %635 = vmatmul.mubr.bf16.gmra.mxu0 %v363
  %v636 = vpop.f32.mrf.mxu0
  %v637 = vadd.f32 %v100, %v636
  %v638 = vpop.f32.mrf.mxu0
  %v639 = vpop.f32.mrf.mxu0
  %v640 = vadd.f32 %v100, %v639
  %v641 = vpop.f32.mrf.mxu0
  %642 = vmatprep.mubr.bf16.mxu0 0
  %643 = vmatmul.mubr.bf16.gmra.mxu0 %v366
  %v644 = vpop.f32.mrf.mxu0
  %v645 = vadd.f32 %v100, %v644
  %v646 = vpop.f32.mrf.mxu0
  %v647 = vpop.f32.mrf.mxu0
  %v648 = vadd.f32 %v100, %v647
  %v649 = vpop.f32.mrf.mxu0
  %650 = vmatprep.mubr.bf16.mxu0 0
  %651 = vmatmul.mubr.bf16.gmra.mxu0 %v369
  %v652 = vpop.f32.mrf.mxu0
  %v653 = vadd.f32 %v100, %v652
  %v654 = vpop.f32.mrf.mxu0
  %v655 = vpop.f32.mrf.mxu0
  %v656 = vadd.f32 %v100, %v655
  %v657 = vpop.f32.mrf.mxu0
  %658 = vmatprep.mubr.bf16.mxu0 0
  %659 = vmatmul.mubr.bf16.gmra.mxu0 %v372
  %v660 = vpop.f32.mrf.mxu0
  %v661 = vadd.f32 %v100, %v660
  %v662 = vpop.f32.mrf.mxu0
  %v663 = vpop.f32.mrf.mxu0
  %v664 = vadd.f32 %v100, %v663
  %v665 = vpop.f32.mrf.mxu0
  %666 = vdwg.mxu0
  %v667 = vmax.f32 %v413, 0.0
  %v668 = vmax.f32 %v416, 0.0
  %v669 = vmax.f32 %v421, 0.0
  %v670 = vmax.f32 %v424, 0.0
  %v671 = vmax.f32 %v429, 0.0
  %v672 = vmax.f32 %v432, 0.0
  %v673 = vmax.f32 %v437, 0.0
  %v674 = vmax.f32 %v440, 0.0
  %v675 = vmax.f32 %v445, 0.0
  %v676 = vmax.f32 %v448, 0.0
  %v677 = vmax.f32 %v453, 0.0
  %v678 = vmax.f32 %v456, 0.0
  %v679 = vmax.f32 %v461, 0.0
  %v680 = vmax.f32 %v464, 0.0
  %v681 = vmax.f32 %v469, 0.0
  %v682 = vmax.f32 %v472, 0.0
  %v683 = vmax.f32 %v477, 0.0
  %v684 = vmax.f32 %v480, 0.0
  %v685 = vmax.f32 %v485, 0.0
  %v686 = vmax.f32 %v488, 0.0
  %v687 = vmax.f32 %v493, 0.0
  %v688 = vmax.f32 %v496, 0.0
  %v689 = vmax.f32 %v501, 0.0
  %v690 = vmax.f32 %v504, 0.0
  %v691 = vmax.f32 %v509, 0.0
  %v692 = vmax.f32 %v512, 0.0
  %v693 = vmax.f32 %v517, 0.0
  %v694 = vmax.f32 %v520, 0.0
  %v695 = vmax.f32 %v525, 0.0
  %v696 = vmax.f32 %v528, 0.0
  %v697 = vmax.f32 %v533, 0.0
  %v698 = vmax.f32 %v536, 0.0
  %v699 = vmax.f32 %v541, 0.0
  %v700 = vmax.f32 %v544, 0.0
  %v701 = vmax.f32 %v549, 0.0
  %v702 = vmax.f32 %v552, 0.0
  %v703 = vmax.f32 %v557, 0.0
  %v704 = vmax.f32 %v560, 0.0
  %v705 = vmax.f32 %v565, 0.0
  %v706 = vmax.f32 %v568, 0.0
  %v707 = vmax.f32 %v573, 0.0
  %v708 = vmax.f32 %v576, 0.0
  %v709 = vmax.f32 %v581, 0.0
  %v710 = vmax.f32 %v584, 0.0
  %v711 = vmax.f32 %v589, 0.0
  %v712 = vmax.f32 %v592, 0.0
  %v713 = vmax.f32 %v597, 0.0
  %v714 = vmax.f32 %v600, 0.0
  %v715 = vmax.f32 %v605, 0.0
  %v716 = vmax.f32 %v608, 0.0
  %v717 = vmax.f32 %v613, 0.0
  %v718 = vmax.f32 %v616, 0.0
  %v719 = vmax.f32 %v621, 0.0
  %v720 = vmax.f32 %v624, 0.0
  %v721 = vmax.f32 %v629, 0.0
  %v722 = vmax.f32 %v632, 0.0
  %v723 = vmax.f32 %v637, 0.0
  %v724 = vmax.f32 %v640, 0.0
  %v725 = vmax.f32 %v645, 0.0
  %v726 = vmax.f32 %v648, 0.0
  %v727 = vmax.f32 %v653, 0.0
  %v728 = vmax.f32 %v656, 0.0
  %v729 = vmax.f32 %v661, 0.0
  %v730 = vmax.f32 %v664, 0.0
  %v731 = vpack.c.bf16 %v668, %v667
  %v732 = vpack.c.bf16 %v670, %v669
  %v733 = vpack.c.bf16 %v672, %v671
  %v734 = vpack.c.bf16 %v674, %v673
  %v735 = vpack.c.bf16 %v676, %v675
  %v736 = vpack.c.bf16 %v678, %v677
  %v737 = vpack.c.bf16 %v680, %v679
  %v738 = vpack.c.bf16 %v682, %v681
  %v739 = vpack.c.bf16 %v684, %v683
  %v740 = vpack.c.bf16 %v686, %v685
  %v741 = vpack.c.bf16 %v688, %v687
  %v742 = vpack.c.bf16 %v690, %v689
  %v743 = vpack.c.bf16 %v692, %v691
  %v744 = vpack.c.bf16 %v694, %v693
  %v745 = vpack.c.bf16 %v696, %v695
  %v746 = vpack.c.bf16 %v698, %v697
  %v747 = vpack.c.bf16 %v700, %v699
  %v748 = vpack.c.bf16 %v702, %v701
  %v749 = vpack.c.bf16 %v704, %v703
  %v750 = vpack.c.bf16 %v706, %v705
  %v751 = vpack.c.bf16 %v708, %v707
  %v752 = vpack.c.bf16 %v710, %v709
  %v753 = vpack.c.bf16 %v712, %v711
  %v754 = vpack.c.bf16 %v714, %v713
  %v755 = vpack.c.bf16 %v716, %v715
  %v756 = vpack.c.bf16 %v718, %v717
  %v757 = vpack.c.bf16 %v720, %v719
  %v758 = vpack.c.bf16 %v722, %v721
  %v759 = vpack.c.bf16 %v724, %v723
  %v760 = vpack.c.bf16 %v726, %v725
  %v761 = vpack.c.bf16 %v728, %v727
  %v762 = vpack.c.bf16 %v730, %v729
  %v763 = vld [vmem:[%s4] sm:$0xf]
  %v764 = vld [vmem:[%s4 + $0x4] sm:$0xf]
  %v765 = vld [vmem:[%s4 + $0x8] sm:$0xf]
  %v766 = vld [vmem:[%s4 + $0xc] sm:$0xf]
  %v767 = vld [vmem:[%s5] sm:$0x1]
  %v769 = vlaneseq
  %v770 = vshrl.u32 %v769, 7
  %v771 = vsub.s32 0, %v770
  %v772 = vrot.slane %v767, %v771
  %v778 = vunpack.c.l.b16 %v763
  %v779 = vunpack.c.l.b16 %v764
  %v780 = vunpack.c.l.b16 %v765
  %v781 = vunpack.c.l.b16 %v766
  %v782 = vpack.c.b16 %v779, %v778
  %v783 = vpack.c.b16 %v781, %v780
  %vm786 = vcmask 261120
  %v788 = vsel %vm786, %v731, 0
  %v791 = vsel %vm786, %v732, 0
  %v794 = vsel %vm786, %v733, 0
  %v797 = vsel %vm786, %v734, 0
  %v800 = vsel %vm786, %v735, 0
  %v803 = vsel %vm786, %v736, 0
  %v806 = vsel %vm786, %v737, 0
  %v809 = vsel %vm786, %v738, 0
  %v812 = vsel %vm786, %v739, 0
  %v815 = vsel %vm786, %v740, 0
  %v818 = vsel %vm786, %v741, 0
  %v821 = vsel %vm786, %v742, 0
  %v824 = vsel %vm786, %v743, 0
  %v827 = vsel %vm786, %v744, 0
  %v830 = vsel %vm786, %v745, 0
  %v833 = vsel %vm786, %v746, 0
  %v836 = vsel %vm786, %v747, 0
  %v839 = vsel %vm786, %v748, 0
  %v842 = vsel %vm786, %v749, 0
  %v845 = vsel %vm786, %v750, 0
  %v848 = vsel %vm786, %v751, 0
  %v851 = vsel %vm786, %v752, 0
  %v854 = vsel %vm786, %v753, 0
  %v857 = vsel %vm786, %v754, 0
  %v860 = vsel %vm786, %v755, 0
  %v863 = vsel %vm786, %v756, 0
  %v866 = vsel %vm786, %v757, 0
  %v869 = vsel %vm786, %v758, 0
  %v872 = vsel %vm786, %v759, 0
  %v875 = vsel %vm786, %v760, 0
  %v878 = vsel %vm786, %v761, 0
  %v881 = vsel %vm786, %v762, 0
  %883 = vmatprep.subr.bf16.mxu0 0
  %884 = vmatpush1.bf16.msra.mxu0 0
  %885 = vmatprep.subr.bf16.mxu0 0
  %886 = vmatpush1.bf16.msra.mxu0 0
  %887 = vmatprep.subr.bf16.mxu0 0
  %888 = vmatpush1.bf16.msra.mxu0 0
  %889 = vmatprep.subr.bf16.mxu0 0
  %890 = vmatpush1.bf16.msra.mxu0 0
  %891 = vmatprep.subr.bf16.mxu0 0
  %892 = vmatpush1.bf16.msra.mxu0 0
  %893 = vmatprep.subr.bf16.mxu0 0
  %894 = vmatpush1.bf16.msra.mxu0 0
  %895 = vmatprep.subr.bf16.mxu0 0
  %896 = vmatpush1.bf16.msra.mxu0 %v783
  %897 = vmatprep.subr.bf16.mxu0 0
  %898 = vmatpush1.bf16.msra.mxu0 %v782
  %899 = vmatprep.subr.bf16.mxu0 0
  %900 = vmatpush2.bf16.msra.mxu0 0
  %901 = vmatprep.subr.bf16.mxu0 0
  %902 = vmatpush2.bf16.msra.mxu0 0
  %903 = vmatprep.subr.bf16.mxu0 0
  %904 = vmatpush2.bf16.msra.mxu0 0
  %905 = vmatprep.subr.bf16.mxu0 0
  %906 = vmatpush2.bf16.msra.mxu0 0
  %907 = vmatprep.subr.bf16.mxu0 0
  %908 = vmatpush2.bf16.msra.mxu0 0
  %909 = vmatprep.subr.bf16.mxu0 0
  %910 = vmatpush2.bf16.msra.mxu0 0
  %911 = vmatprep.subr.bf16.mxu0 0
  %912 = vmatpush2.bf16.msra.mxu0 0
  %913 = vmatprep.subr.bf16.mxu0 0
  %914 = vmatpush2.bf16.msra.mxu0 0
  %915 = vmatprep.mubr.bf16.mxu0 0
  %916 = vmatmul.mubr.bf16.gmra.mxu0 %v788
  %v917 = vpop.f32.mrf.mxu0
  %v918 = vadd.f32 %v772, %v917
  %v919 = vpop.f32.mrf.mxu0
  %v920 = vpop.f32.mrf.mxu0
  %v921 = vadd.f32 %v772, %v920
  %v922 = vpop.f32.mrf.mxu0
  %923 = vmatprep.mubr.bf16.mxu0 0
  %924 = vmatmul.mubr.bf16.gmra.mxu0 %v791
  %v925 = vpop.f32.mrf.mxu0
  %v926 = vadd.f32 %v772, %v925
  %v927 = vpop.f32.mrf.mxu0
  %v928 = vpop.f32.mrf.mxu0
  %v929 = vadd.f32 %v772, %v928
  %v930 = vpop.f32.mrf.mxu0
  %931 = vmatprep.mubr.bf16.mxu0 0
  %932 = vmatmul.mubr.bf16.gmra.mxu0 %v794
  %v933 = vpop.f32.mrf.mxu0
  %v934 = vadd.f32 %v772, %v933
  %v935 = vpop.f32.mrf.mxu0
  %v936 = vpop.f32.mrf.mxu0
  %v937 = vadd.f32 %v772, %v936
  %v938 = vpop.f32.mrf.mxu0
  %939 = vmatprep.mubr.bf16.mxu0 0
  %940 = vmatmul.mubr.bf16.gmra.mxu0 %v797
  %v941 = vpop.f32.mrf.mxu0
  %v942 = vadd.f32 %v772, %v941
  %v943 = vpop.f32.mrf.mxu0
  %v944 = vpop.f32.mrf.mxu0
  %v945 = vadd.f32 %v772, %v944
  %v946 = vpop.f32.mrf.mxu0
  %947 = vmatprep.mubr.bf16.mxu0 0
  %948 = vmatmul.mubr.bf16.gmra.mxu0 %v800
  %v949 = vpop.f32.mrf.mxu0
  %v950 = vadd.f32 %v772, %v949
  %v951 = vpop.f32.mrf.mxu0
  %v952 = vpop.f32.mrf.mxu0
  %v953 = vadd.f32 %v772, %v952
  %v954 = vpop.f32.mrf.mxu0
  %955 = vmatprep.mubr.bf16.mxu0 0
  %956 = vmatmul.mubr.bf16.gmra.mxu0 %v803
  %v957 = vpop.f32.mrf.mxu0
  %v958 = vadd.f32 %v772, %v957
  %v959 = vpop.f32.mrf.mxu0
  %v960 = vpop.f32.mrf.mxu0
  %v961 = vadd.f32 %v772, %v960
  %v962 = vpop.f32.mrf.mxu0
  %963 = vmatprep.mubr.bf16.mxu0 0
  %964 = vmatmul.mubr.bf16.gmra.mxu0 %v806
  %v965 = vpop.f32.mrf.mxu0
  %v966 = vadd.f32 %v772, %v965
  %v967 = vpop.f32.mrf.mxu0
  %v968 = vpop.f32.mrf.mxu0
  %v969 = vadd.f32 %v772, %v968
  %v970 = vpop.f32.mrf.mxu0
  %971 = vmatprep.mubr.bf16.mxu0 0
  %972 = vmatmul.mubr.bf16.gmra.mxu0 %v809
  %v973 = vpop.f32.mrf.mxu0
  %v974 = vadd.f32 %v772, %v973
  %v975 = vpop.f32.mrf.mxu0
  %v976 = vpop.f32.mrf.mxu0
  %v977 = vadd.f32 %v772, %v976
  %v978 = vpop.f32.mrf.mxu0
  %979 = vmatprep.mubr.bf16.mxu0 0
  %980 = vmatmul.mubr.bf16.gmra.mxu0 %v812
  %v981 = vpop.f32.mrf.mxu0
  %v982 = vadd.f32 %v772, %v981
  %v983 = vpop.f32.mrf.mxu0
  %v984 = vpop.f32.mrf.mxu0
  %v985 = vadd.f32 %v772, %v984
  %v986 = vpop.f32.mrf.mxu0
  %987 = vmatprep.mubr.bf16.mxu0 0
  %988 = vmatmul.mubr.bf16.gmra.mxu0 %v815
  %v989 = vpop.f32.mrf.mxu0
  %v990 = vadd.f32 %v772, %v989
  %v991 = vpop.f32.mrf.mxu0
  %v992 = vpop.f32.mrf.mxu0
  %v993 = vadd.f32 %v772, %v992
  %v994 = vpop.f32.mrf.mxu0
  %995 = vmatprep.mubr.bf16.mxu0 0
  %996 = vmatmul.mubr.bf16.gmra.mxu0 %v818
  %v997 = vpop.f32.mrf.mxu0
  %v998 = vadd.f32 %v772, %v997
  %v999 = vpop.f32.mrf.mxu0
  %v1000 = vpop.f32.mrf.mxu0
  %v1001 = vadd.f32 %v772, %v1000
  %v1002 = vpop.f32.mrf.mxu0
  %1003 = vmatprep.mubr.bf16.mxu0 0
  %1004 = vmatmul.mubr.bf16.gmra.mxu0 %v821
  %v1005 = vpop.f32.mrf.mxu0
  %v1006 = vadd.f32 %v772, %v1005
  %v1007 = vpop.f32.mrf.mxu0
  %v1008 = vpop.f32.mrf.mxu0
  %v1009 = vadd.f32 %v772, %v1008
  %v1010 = vpop.f32.mrf.mxu0
  %1011 = vmatprep.mubr.bf16.mxu0 0
  %1012 = vmatmul.mubr.bf16.gmra.mxu0 %v824
  %v1013 = vpop.f32.mrf.mxu0
  %v1014 = vadd.f32 %v772, %v1013
  %v1015 = vpop.f32.mrf.mxu0
  %v1016 = vpop.f32.mrf.mxu0
  %v1017 = vadd.f32 %v772, %v1016
  %v1018 = vpop.f32.mrf.mxu0
  %1019 = vmatprep.mubr.bf16.mxu0 0
  %1020 = vmatmul.mubr.bf16.gmra.mxu0 %v827
  %v1021 = vpop.f32.mrf.mxu0
  %v1022 = vadd.f32 %v772, %v1021
  %v1023 = vpop.f32.mrf.mxu0
  %v1024 = vpop.f32.mrf.mxu0
  %v1025 = vadd.f32 %v772, %v1024
  %v1026 = vpop.f32.mrf.mxu0
  %1027 = vmatprep.mubr.bf16.mxu0 0
  %1028 = vmatmul.mubr.bf16.gmra.mxu0 %v830
  %v1029 = vpop.f32.mrf.mxu0
  %v1030 = vadd.f32 %v772, %v1029
  %v1031 = vpop.f32.mrf.mxu0
  %v1032 = vpop.f32.mrf.mxu0
  %v1033 = vadd.f32 %v772, %v1032
  %v1034 = vpop.f32.mrf.mxu0
  %1035 = vmatprep.mubr.bf16.mxu0 0
  %1036 = vmatmul.mubr.bf16.gmra.mxu0 %v833
  %v1037 = vpop.f32.mrf.mxu0
  %v1038 = vadd.f32 %v772, %v1037
  %v1039 = vpop.f32.mrf.mxu0
  %v1040 = vpop.f32.mrf.mxu0
  %v1041 = vadd.f32 %v772, %v1040
  %v1042 = vpop.f32.mrf.mxu0
  %1043 = vmatprep.mubr.bf16.mxu0 0
  %1044 = vmatmul.mubr.bf16.gmra.mxu0 %v836
  %v1045 = vpop.f32.mrf.mxu0
  %v1046 = vadd.f32 %v772, %v1045
  %v1047 = vpop.f32.mrf.mxu0
  %v1048 = vpop.f32.mrf.mxu0
  %v1049 = vadd.f32 %v772, %v1048
  %v1050 = vpop.f32.mrf.mxu0
  %1051 = vmatprep.mubr.bf16.mxu0 0
  %1052 = vmatmul.mubr.bf16.gmra.mxu0 %v839
  %v1053 = vpop.f32.mrf.mxu0
  %v1054 = vadd.f32 %v772, %v1053
  %v1055 = vpop.f32.mrf.mxu0
  %v1056 = vpop.f32.mrf.mxu0
  %v1057 = vadd.f32 %v772, %v1056
  %v1058 = vpop.f32.mrf.mxu0
  %1059 = vmatprep.mubr.bf16.mxu0 0
  %1060 = vmatmul.mubr.bf16.gmra.mxu0 %v842
  %v1061 = vpop.f32.mrf.mxu0
  %v1062 = vadd.f32 %v772, %v1061
  %v1063 = vpop.f32.mrf.mxu0
  %v1064 = vpop.f32.mrf.mxu0
  %v1065 = vadd.f32 %v772, %v1064
  %v1066 = vpop.f32.mrf.mxu0
  %1067 = vmatprep.mubr.bf16.mxu0 0
  %1068 = vmatmul.mubr.bf16.gmra.mxu0 %v845
  %v1069 = vpop.f32.mrf.mxu0
  %v1070 = vadd.f32 %v772, %v1069
  %v1071 = vpop.f32.mrf.mxu0
  %v1072 = vpop.f32.mrf.mxu0
  %v1073 = vadd.f32 %v772, %v1072
  %v1074 = vpop.f32.mrf.mxu0
  %1075 = vmatprep.mubr.bf16.mxu0 0
  %1076 = vmatmul.mubr.bf16.gmra.mxu0 %v848
  %v1077 = vpop.f32.mrf.mxu0
  %v1078 = vadd.f32 %v772, %v1077
  %v1079 = vpop.f32.mrf.mxu0
  %v1080 = vpop.f32.mrf.mxu0
  %v1081 = vadd.f32 %v772, %v1080
  %v1082 = vpop.f32.mrf.mxu0
  %1083 = vmatprep.mubr.bf16.mxu0 0
  %1084 = vmatmul.mubr.bf16.gmra.mxu0 %v851
  %v1085 = vpop.f32.mrf.mxu0
  %v1086 = vadd.f32 %v772, %v1085
  %v1087 = vpop.f32.mrf.mxu0
  %v1088 = vpop.f32.mrf.mxu0
  %v1089 = vadd.f32 %v772, %v1088
  %v1090 = vpop.f32.mrf.mxu0
  %1091 = vmatprep.mubr.bf16.mxu0 0
  %1092 = vmatmul.mubr.bf16.gmra.mxu0 %v854
  %v1093 = vpop.f32.mrf.mxu0
  %v1094 = vadd.f32 %v772, %v1093
  %v1095 = vpop.f32.mrf.mxu0
  %v1096 = vpop.f32.mrf.mxu0
  %v1097 = vadd.f32 %v772, %v1096
  %v1098 = vpop.f32.mrf.mxu0
  %1099 = vmatprep.mubr.bf16.mxu0 0
  %1100 = vmatmul.mubr.bf16.gmra.mxu0 %v857
  %v1101 = vpop.f32.mrf.mxu0
  %v1102 = vadd.f32 %v772, %v1101
  %v1103 = vpop.f32.mrf.mxu0
  %v1104 = vpop.f32.mrf.mxu0
  %v1105 = vadd.f32 %v772, %v1104
  %v1106 = vpop.f32.mrf.mxu0
  %1107 = vmatprep.mubr.bf16.mxu0 0
  %1108 = vmatmul.mubr.bf16.gmra.mxu0 %v860
  %v1109 = vpop.f32.mrf.mxu0
  %v1110 = vadd.f32 %v772, %v1109
  %v1111 = vpop.f32.mrf.mxu0
  %v1112 = vpop.f32.mrf.mxu0
  %v1113 = vadd.f32 %v772, %v1112
  %v1114 = vpop.f32.mrf.mxu0
  %1115 = vmatprep.mubr.bf16.mxu0 0
  %1116 = vmatmul.mubr.bf16.gmra.mxu0 %v863
  %v1117 = vpop.f32.mrf.mxu0
  %v1118 = vadd.f32 %v772, %v1117
  %v1119 = vpop.f32.mrf.mxu0
  %v1120 = vpop.f32.mrf.mxu0
  %v1121 = vadd.f32 %v772, %v1120
  %v1122 = vpop.f32.mrf.mxu0
  %1123 = vmatprep.mubr.bf16.mxu0 0
  %1124 = vmatmul.mubr.bf16.gmra.mxu0 %v866
  %v1125 = vpop.f32.mrf.mxu0
  %v1126 = vadd.f32 %v772, %v1125
  %v1127 = vpop.f32.mrf.mxu0
  %v1128 = vpop.f32.mrf.mxu0
  %v1129 = vadd.f32 %v772, %v1128
  %v1130 = vpop.f32.mrf.mxu0
  %1131 = vmatprep.mubr.bf16.mxu0 0
  %1132 = vmatmul.mubr.bf16.gmra.mxu0 %v869
  %v1133 = vpop.f32.mrf.mxu0
  %v1134 = vadd.f32 %v772, %v1133
  %v1135 = vpop.f32.mrf.mxu0
  %v1136 = vpop.f32.mrf.mxu0
  %v1137 = vadd.f32 %v772, %v1136
  %v1138 = vpop.f32.mrf.mxu0
  %1139 = vmatprep.mubr.bf16.mxu0 0
  %1140 = vmatmul.mubr.bf16.gmra.mxu0 %v872
  %v1141 = vpop.f32.mrf.mxu0
  %v1142 = vadd.f32 %v772, %v1141
  %v1143 = vpop.f32.mrf.mxu0
  %v1144 = vpop.f32.mrf.mxu0
  %v1145 = vadd.f32 %v772, %v1144
  %v1146 = vpop.f32.mrf.mxu0
  %1147 = vmatprep.mubr.bf16.mxu0 0
  %1148 = vmatmul.mubr.bf16.gmra.mxu0 %v875
  %v1149 = vpop.f32.mrf.mxu0
  %v1150 = vadd.f32 %v772, %v1149
  %v1151 = vpop.f32.mrf.mxu0
  %v1152 = vpop.f32.mrf.mxu0
  %v1153 = vadd.f32 %v772, %v1152
  %v1154 = vpop.f32.mrf.mxu0
  %1155 = vmatprep.mubr.bf16.mxu0 0
  %1156 = vmatmul.mubr.bf16.gmra.mxu0 %v878
  %v1157 = vpop.f32.mrf.mxu0
  %v1158 = vadd.f32 %v772, %v1157
  %v1159 = vpop.f32.mrf.mxu0
  %v1160 = vpop.f32.mrf.mxu0
  %v1161 = vadd.f32 %v772, %v1160
  %v1162 = vpop.f32.mrf.mxu0
  %1163 = vmatprep.mubr.bf16.mxu0 0
  %1164 = vmatmul.mubr.bf16.gmra.mxu0 %v881
  %v1165 = vpop.f32.mrf.mxu0
  %v1166 = vadd.f32 %v772, %v1165
  %v1167 = vpop.f32.mrf.mxu0
  %v1168 = vpop.f32.mrf.mxu0
  %v1169 = vadd.f32 %v772, %v1168
  %v1170 = vpop.f32.mrf.mxu0
  %1171 = vdwg.mxu0
  %vm1172 = vcmask 97280
  %1173 = vst.msk [vmem:[%s6] sm:$0xff] %vm1172, %v918
  %1174 = vst.msk [vmem:[%s6 + $0x8] sm:$0xff] %vm1172, %v921
  %1175 = vst.msk [vmem:[%s6 + $0x10] sm:$0xff] %vm1172, %v926
  %1176 = vst.msk [vmem:[%s6 + $0x18] sm:$0xff] %vm1172, %v929
  %1177 = vst.msk [vmem:[%s6 + $0x20] sm:$0xff] %vm1172, %v934
  %1178 = vst.msk [vmem:[%s6 + $0x28] sm:$0xff] %vm1172, %v937
  %1179 = vst.msk [vmem:[%s6 + $0x30] sm:$0xff] %vm1172, %v942
  %1180 = vst.msk [vmem:[%s6 + $0x38] sm:$0xff] %vm1172, %v945
  %1181 = vst.msk [vmem:[%s6 + $0x40] sm:$0xff] %vm1172, %v950
  %1182 = vst.msk [vmem:[%s6 + $0x48] sm:$0xff] %vm1172, %v953
  %1183 = vst.msk [vmem:[%s6 + $0x50] sm:$0xff] %vm1172, %v958
  %1184 = vst.msk [vmem:[%s6 + $0x58] sm:$0xff] %vm1172, %v961
  %1185 = vst.msk [vmem:[%s6 + $0x60] sm:$0xff] %vm1172, %v966
  %1186 = vst.msk [vmem:[%s6 + $0x68] sm:$0xff] %vm1172, %v969
  %1187 = vst.msk [vmem:[%s6 + $0x70] sm:$0xff] %vm1172, %v974
  %1188 = vst.msk [vmem:[%s6 + $0x78] sm:$0xff] %vm1172, %v977
  %1189 = vst.msk [vmem:[%s6 + $0x80] sm:$0xff] %vm1172, %v982
  %1190 = vst.msk [vmem:[%s6 + $0x88] sm:$0xff] %vm1172, %v985
  %1191 = vst.msk [vmem:[%s6 + $0x90] sm:$0xff] %vm1172, %v990
  %1192 = vst.msk [vmem:[%s6 + $0x98] sm:$0xff] %vm1172, %v993
  %1193 = vst.msk [vmem:[%s6 + $0xa0] sm:$0xff] %vm1172, %v998
  %1194 = vst.msk [vmem:[%s6 + $0xa8] sm:$0xff] %vm1172, %v1001
  %1195 = vst.msk [vmem:[%s6 + $0xb0] sm:$0xff] %vm1172, %v1006
  %1196 = vst.msk [vmem:[%s6 + $0xb8] sm:$0xff] %vm1172, %v1009
  %1197 = vst.msk [vmem:[%s6 + $0xc0] sm:$0xff] %vm1172, %v1014
  %1198 = vst.msk [vmem:[%s6 + $0xc8] sm:$0xff] %vm1172, %v1017
  %1199 = vst.msk [vmem:[%s6 + $0xd0] sm:$0xff] %vm1172, %v1022
  %1200 = vst.msk [vmem:[%s6 + $0xd8] sm:$0xff] %vm1172, %v1025
  %1201 = vst.msk [vmem:[%s6 + $0xe0] sm:$0xff] %vm1172, %v1030
  %1202 = vst.msk [vmem:[%s6 + $0xe8] sm:$0xff] %vm1172, %v1033
  %1203 = vst.msk [vmem:[%s6 + $0xf0] sm:$0xff] %vm1172, %v1038
  %1204 = vst.msk [vmem:[%s6 + $0xf8] sm:$0xff] %vm1172, %v1041
  %1205 = vst.msk [vmem:[%s6 + $0x100] sm:$0xff] %vm1172, %v1046
  %1206 = vst.msk [vmem:[%s6 + $0x108] sm:$0xff] %vm1172, %v1049
  %1207 = vst.msk [vmem:[%s6 + $0x110] sm:$0xff] %vm1172, %v1054
  %1208 = vst.msk [vmem:[%s6 + $0x118] sm:$0xff] %vm1172, %v1057
  %1209 = vst.msk [vmem:[%s6 + $0x120] sm:$0xff] %vm1172, %v1062
  %1210 = vst.msk [vmem:[%s6 + $0x128] sm:$0xff] %vm1172, %v1065
  %1211 = vst.msk [vmem:[%s6 + $0x130] sm:$0xff] %vm1172, %v1070
  %1212 = vst.msk [vmem:[%s6 + $0x138] sm:$0xff] %vm1172, %v1073
  %1213 = vst.msk [vmem:[%s6 + $0x140] sm:$0xff] %vm1172, %v1078
  %1214 = vst.msk [vmem:[%s6 + $0x148] sm:$0xff] %vm1172, %v1081
  %1215 = vst.msk [vmem:[%s6 + $0x150] sm:$0xff] %vm1172, %v1086
  %1216 = vst.msk [vmem:[%s6 + $0x158] sm:$0xff] %vm1172, %v1089
  %1217 = vst.msk [vmem:[%s6 + $0x160] sm:$0xff] %vm1172, %v1094
  %1218 = vst.msk [vmem:[%s6 + $0x168] sm:$0xff] %vm1172, %v1097
  %1219 = vst.msk [vmem:[%s6 + $0x170] sm:$0xff] %vm1172, %v1102
  %1220 = vst.msk [vmem:[%s6 + $0x178] sm:$0xff] %vm1172, %v1105
  %1221 = vst.msk [vmem:[%s6 + $0x180] sm:$0xff] %vm1172, %v1110
  %1222 = vst.msk [vmem:[%s6 + $0x188] sm:$0xff] %vm1172, %v1113
  %1223 = vst.msk [vmem:[%s6 + $0x190] sm:$0xff] %vm1172, %v1118
  %1224 = vst.msk [vmem:[%s6 + $0x198] sm:$0xff] %vm1172, %v1121
  %1225 = vst.msk [vmem:[%s6 + $0x1a0] sm:$0xff] %vm1172, %v1126
  %1226 = vst.msk [vmem:[%s6 + $0x1a8] sm:$0xff] %vm1172, %v1129
  %1227 = vst.msk [vmem:[%s6 + $0x1b0] sm:$0xff] %vm1172, %v1134
  %1228 = vst.msk [vmem:[%s6 + $0x1b8] sm:$0xff] %vm1172, %v1137
  %1229 = vst.msk [vmem:[%s6 + $0x1c0] sm:$0xff] %vm1172, %v1142
  %1230 = vst.msk [vmem:[%s6 + $0x1c8] sm:$0xff] %vm1172, %v1145
  %1231 = vst.msk [vmem:[%s6 + $0x1d0] sm:$0xff] %vm1172, %v1150
  %1232 = vst.msk [vmem:[%s6 + $0x1d8] sm:$0xff] %vm1172, %v1153
  %1233 = vst.msk [vmem:[%s6 + $0x1e0] sm:$0xff] %vm1172, %v1158
  %1234 = vst.msk [vmem:[%s6 + $0x1e8] sm:$0xff] %vm1172, %v1161
  %1235 = vst.msk [vmem:[%s6 + $0x1f0] sm:$0xff] %vm1172, %v1166
  %1236 = vst.msk [vmem:[%s6 + $0x1f8] sm:$0xff] %vm1172, %v1169
  %v1237 = vlaneseq
  %v1238 = vand.u32 %v1237, 127
  %vm1239 = vcmp.lt.s32.totalorder %v1238, 8
  %v1240 = vld [vmem:[%s1] sm:$0xff]
  %v1241 = vld [vmem:[%s1 + $0x8] sm:$0xff]
  %v1242 = vld [vmem:[%s1 + $0x10] sm:$0xff]
  %v1243 = vld [vmem:[%s1 + $0x18] sm:$0xff]
  %v1244 = vld [vmem:[%s1 + $0x20] sm:$0xff]
  %v1245 = vld [vmem:[%s1 + $0x28] sm:$0xff]
  %v1246 = vld [vmem:[%s1 + $0x30] sm:$0xff]
  %v1247 = vld [vmem:[%s1 + $0x38] sm:$0xff]
  %v1248 = vld [vmem:[%s1 + $0x40] sm:$0xff]
  %v1249 = vld [vmem:[%s1 + $0x48] sm:$0xff]
  %v1250 = vld [vmem:[%s1 + $0x50] sm:$0xff]
  %v1251 = vld [vmem:[%s1 + $0x58] sm:$0xff]
  %v1252 = vld [vmem:[%s1 + $0x60] sm:$0xff]
  %v1253 = vld [vmem:[%s1 + $0x68] sm:$0xff]
  %v1254 = vld [vmem:[%s1 + $0x70] sm:$0xff]
  %v1255 = vld [vmem:[%s1 + $0x78] sm:$0xff]
  %v1256 = vld [vmem:[%s1 + $0x80] sm:$0xff]
  %v1257 = vld [vmem:[%s1 + $0x88] sm:$0xff]
  %v1258 = vld [vmem:[%s1 + $0x90] sm:$0xff]
  %v1259 = vld [vmem:[%s1 + $0x98] sm:$0xff]
  %v1260 = vld [vmem:[%s1 + $0xa0] sm:$0xff]
  %v1261 = vld [vmem:[%s1 + $0xa8] sm:$0xff]
  %v1262 = vld [vmem:[%s1 + $0xb0] sm:$0xff]
  %v1263 = vld [vmem:[%s1 + $0xb8] sm:$0xff]
  %v1264 = vld [vmem:[%s1 + $0xc0] sm:$0xff]
  %v1265 = vld [vmem:[%s1 + $0xc8] sm:$0xff]
  %v1266 = vld [vmem:[%s1 + $0xd0] sm:$0xff]
  %v1267 = vld [vmem:[%s1 + $0xd8] sm:$0xff]
  %v1268 = vld [vmem:[%s1 + $0xe0] sm:$0xff]
  %v1269 = vld [vmem:[%s1 + $0xe8] sm:$0xff]
  %v1270 = vld [vmem:[%s1 + $0xf0] sm:$0xff]
  %v1271 = vld [vmem:[%s1 + $0xf8] sm:$0xff]
  %v1272 = vld [vmem:[%s1 + $0x100] sm:$0xff]
  %v1273 = vld [vmem:[%s1 + $0x108] sm:$0xff]
  %v1274 = vld [vmem:[%s1 + $0x110] sm:$0xff]
  %v1275 = vld [vmem:[%s1 + $0x118] sm:$0xff]
  %v1276 = vld [vmem:[%s1 + $0x120] sm:$0xff]
  %v1277 = vld [vmem:[%s1 + $0x128] sm:$0xff]
  %v1278 = vld [vmem:[%s1 + $0x130] sm:$0xff]
  %v1279 = vld [vmem:[%s1 + $0x138] sm:$0xff]
  %v1280 = vld [vmem:[%s1 + $0x140] sm:$0xff]
  %v1281 = vld [vmem:[%s1 + $0x148] sm:$0xff]
  %v1282 = vld [vmem:[%s1 + $0x150] sm:$0xff]
  %v1283 = vld [vmem:[%s1 + $0x158] sm:$0xff]
  %v1284 = vld [vmem:[%s1 + $0x160] sm:$0xff]
  %v1285 = vld [vmem:[%s1 + $0x168] sm:$0xff]
  %v1286 = vld [vmem:[%s1 + $0x170] sm:$0xff]
  %v1287 = vld [vmem:[%s1 + $0x178] sm:$0xff]
  %v1288 = vld [vmem:[%s1 + $0x180] sm:$0xff]
  %v1289 = vld [vmem:[%s1 + $0x188] sm:$0xff]
  %v1290 = vld [vmem:[%s1 + $0x190] sm:$0xff]
  %v1291 = vld [vmem:[%s1 + $0x198] sm:$0xff]
  %v1292 = vld [vmem:[%s1 + $0x1a0] sm:$0xff]
  %v1293 = vld [vmem:[%s1 + $0x1a8] sm:$0xff]
  %v1294 = vld [vmem:[%s1 + $0x1b0] sm:$0xff]
  %v1295 = vld [vmem:[%s1 + $0x1b8] sm:$0xff]
  %v1296 = vld [vmem:[%s1 + $0x1c0] sm:$0xff]
  %v1297 = vld [vmem:[%s1 + $0x1c8] sm:$0xff]
  %v1298 = vld [vmem:[%s1 + $0x1d0] sm:$0xff]
  %v1299 = vld [vmem:[%s1 + $0x1d8] sm:$0xff]
  %v1300 = vld [vmem:[%s1 + $0x1e0] sm:$0xff]
  %v1301 = vld [vmem:[%s1 + $0x1e8] sm:$0xff]
  %v1302 = vld [vmem:[%s1 + $0x1f0] sm:$0xff]
  %v1303 = vld [vmem:[%s1 + $0x1f8] sm:$0xff]
  %1304 = vset.pattern.permute.xlu0 0
  %1305 = vperm.xlu0 %1304, %v1240
  %v1306 = vpop.permute.xlu0 %1305
  %1307 = vset.pattern.permute.xlu0 0
  %1308 = vperm.xlu0 %1307, %v1241
  %v1309 = vpop.permute.xlu0 %1308
  %1310 = vset.pattern.permute.xlu0 0
  %1311 = vperm.xlu0 %1310, %v1242
  %v1312 = vpop.permute.xlu0 %1311
  %1313 = vset.pattern.permute.xlu0 0
  %1314 = vperm.xlu0 %1313, %v1243
  %v1315 = vpop.permute.xlu0 %1314
  %1316 = vset.pattern.permute.xlu0 0
  %1317 = vperm.xlu0 %1316, %v1244
  %v1318 = vpop.permute.xlu0 %1317
  %1319 = vset.pattern.permute.xlu0 0
  %1320 = vperm.xlu0 %1319, %v1245
  %v1321 = vpop.permute.xlu0 %1320
  %1322 = vset.pattern.permute.xlu0 0
  %1323 = vperm.xlu0 %1322, %v1246
  %v1324 = vpop.permute.xlu0 %1323
  %1325 = vset.pattern.permute.xlu0 0
  %1326 = vperm.xlu0 %1325, %v1247
  %v1327 = vpop.permute.xlu0 %1326
  %1328 = vset.pattern.permute.xlu0 0
  %1329 = vperm.xlu0 %1328, %v1248
  %v1330 = vpop.permute.xlu0 %1329
  %1331 = vset.pattern.permute.xlu0 0
  %1332 = vperm.xlu0 %1331, %v1249
  %v1333 = vpop.permute.xlu0 %1332
  %1334 = vset.pattern.permute.xlu0 0
  %1335 = vperm.xlu0 %1334, %v1250
  %v1336 = vpop.permute.xlu0 %1335
  %1337 = vset.pattern.permute.xlu0 0
  %1338 = vperm.xlu0 %1337, %v1251
  %v1339 = vpop.permute.xlu0 %1338
  %1340 = vset.pattern.permute.xlu0 0
  %1341 = vperm.xlu0 %1340, %v1252
  %v1342 = vpop.permute.xlu0 %1341
  %1343 = vset.pattern.permute.xlu0 0
  %1344 = vperm.xlu0 %1343, %v1253
  %v1345 = vpop.permute.xlu0 %1344
  %1346 = vset.pattern.permute.xlu0 0
  %1347 = vperm.xlu0 %1346, %v1254
  %v1348 = vpop.permute.xlu0 %1347
  %1349 = vset.pattern.permute.xlu0 0
  %1350 = vperm.xlu0 %1349, %v1255
  %v1351 = vpop.permute.xlu0 %1350
  %1352 = vset.pattern.permute.xlu0 0
  %1353 = vperm.xlu0 %1352, %v1256
  %v1354 = vpop.permute.xlu0 %1353
  %1355 = vset.pattern.permute.xlu0 0
  %1356 = vperm.xlu0 %1355, %v1257
  %v1357 = vpop.permute.xlu0 %1356
  %1358 = vset.pattern.permute.xlu0 0
  %1359 = vperm.xlu0 %1358, %v1258
  %v1360 = vpop.permute.xlu0 %1359
  %1361 = vset.pattern.permute.xlu0 0
  %1362 = vperm.xlu0 %1361, %v1259
  %v1363 = vpop.permute.xlu0 %1362
  %1364 = vset.pattern.permute.xlu0 0
  %1365 = vperm.xlu0 %1364, %v1260
  %v1366 = vpop.permute.xlu0 %1365
  %1367 = vset.pattern.permute.xlu0 0
  %1368 = vperm.xlu0 %1367, %v1261
  %v1369 = vpop.permute.xlu0 %1368
  %1370 = vset.pattern.permute.xlu0 0
  %1371 = vperm.xlu0 %1370, %v1262
  %v1372 = vpop.permute.xlu0 %1371
  %1373 = vset.pattern.permute.xlu0 0
  %1374 = vperm.xlu0 %1373, %v1263
  %v1375 = vpop.permute.xlu0 %1374
  %1376 = vset.pattern.permute.xlu0 0
  %1377 = vperm.xlu0 %1376, %v1264
  %v1378 = vpop.permute.xlu0 %1377
  %1379 = vset.pattern.permute.xlu0 0
  %1380 = vperm.xlu0 %1379, %v1265
  %v1381 = vpop.permute.xlu0 %1380
  %1382 = vset.pattern.permute.xlu0 0
  %1383 = vperm.xlu0 %1382, %v1266
  %v1384 = vpop.permute.xlu0 %1383
  %1385 = vset.pattern.permute.xlu0 0
  %1386 = vperm.xlu0 %1385, %v1267
  %v1387 = vpop.permute.xlu0 %1386
  %1388 = vset.pattern.permute.xlu0 0
  %1389 = vperm.xlu0 %1388, %v1268
  %v1390 = vpop.permute.xlu0 %1389
  %1391 = vset.pattern.permute.xlu0 0
  %1392 = vperm.xlu0 %1391, %v1269
  %v1393 = vpop.permute.xlu0 %1392
  %1394 = vset.pattern.permute.xlu0 0
  %1395 = vperm.xlu0 %1394, %v1270
  %v1396 = vpop.permute.xlu0 %1395
  %1397 = vset.pattern.permute.xlu0 0
  %1398 = vperm.xlu0 %1397, %v1271
  %v1399 = vpop.permute.xlu0 %1398
  %1400 = vset.pattern.permute.xlu0 0
  %1401 = vperm.xlu0 %1400, %v1272
  %v1402 = vpop.permute.xlu0 %1401
  %1403 = vset.pattern.permute.xlu0 0
  %1404 = vperm.xlu0 %1403, %v1273
  %v1405 = vpop.permute.xlu0 %1404
  %1406 = vset.pattern.permute.xlu0 0
  %1407 = vperm.xlu0 %1406, %v1274
  %v1408 = vpop.permute.xlu0 %1407
  %1409 = vset.pattern.permute.xlu0 0
  %1410 = vperm.xlu0 %1409, %v1275
  %v1411 = vpop.permute.xlu0 %1410
  %1412 = vset.pattern.permute.xlu0 0
  %1413 = vperm.xlu0 %1412, %v1276
  %v1414 = vpop.permute.xlu0 %1413
  %1415 = vset.pattern.permute.xlu0 0
  %1416 = vperm.xlu0 %1415, %v1277
  %v1417 = vpop.permute.xlu0 %1416
  %1418 = vset.pattern.permute.xlu0 0
  %1419 = vperm.xlu0 %1418, %v1278
  %v1420 = vpop.permute.xlu0 %1419
  %1421 = vset.pattern.permute.xlu0 0
  %1422 = vperm.xlu0 %1421, %v1279
  %v1423 = vpop.permute.xlu0 %1422
  %1424 = vset.pattern.permute.xlu0 0
  %1425 = vperm.xlu0 %1424, %v1280
  %v1426 = vpop.permute.xlu0 %1425
  %1427 = vset.pattern.permute.xlu0 0
  %1428 = vperm.xlu0 %1427, %v1281
  %v1429 = vpop.permute.xlu0 %1428
  %1430 = vset.pattern.permute.xlu0 0
  %1431 = vperm.xlu0 %1430, %v1282
  %v1432 = vpop.permute.xlu0 %1431
  %1433 = vset.pattern.permute.xlu0 0
  %1434 = vperm.xlu0 %1433, %v1283
  %v1435 = vpop.permute.xlu0 %1434
  %1436 = vset.pattern.permute.xlu0 0
  %1437 = vperm.xlu0 %1436, %v1284
  %v1438 = vpop.permute.xlu0 %1437
  %1439 = vset.pattern.permute.xlu0 0
  %1440 = vperm.xlu0 %1439, %v1285
  %v1441 = vpop.permute.xlu0 %1440
  %1442 = vset.pattern.permute.xlu0 0
  %1443 = vperm.xlu0 %1442, %v1286
  %v1444 = vpop.permute.xlu0 %1443
  %1445 = vset.pattern.permute.xlu0 0
  %1446 = vperm.xlu0 %1445, %v1287
  %v1447 = vpop.permute.xlu0 %1446
  %1448 = vset.pattern.permute.xlu0 0
  %1449 = vperm.xlu0 %1448, %v1288
  %v1450 = vpop.permute.xlu0 %1449
  %1451 = vset.pattern.permute.xlu0 0
  %1452 = vperm.xlu0 %1451, %v1289
  %v1453 = vpop.permute.xlu0 %1452
  %1454 = vset.pattern.permute.xlu0 0
  %1455 = vperm.xlu0 %1454, %v1290
  %v1456 = vpop.permute.xlu0 %1455
  %1457 = vset.pattern.permute.xlu0 0
  %1458 = vperm.xlu0 %1457, %v1291
  %v1459 = vpop.permute.xlu0 %1458
  %1460 = vset.pattern.permute.xlu0 0
  %1461 = vperm.xlu0 %1460, %v1292
  %v1462 = vpop.permute.xlu0 %1461
  %1463 = vset.pattern.permute.xlu0 0
  %1464 = vperm.xlu0 %1463, %v1293
  %v1465 = vpop.permute.xlu0 %1464
  %1466 = vset.pattern.permute.xlu0 0
  %1467 = vperm.xlu0 %1466, %v1294
  %v1468 = vpop.permute.xlu0 %1467
  %1469 = vset.pattern.permute.xlu0 0
  %1470 = vperm.xlu0 %1469, %v1295
  %v1471 = vpop.permute.xlu0 %1470
  %1472 = vset.pattern.permute.xlu0 0
  %1473 = vperm.xlu0 %1472, %v1296
  %v1474 = vpop.permute.xlu0 %1473
  %1475 = vset.pattern.permute.xlu0 0
  %1476 = vperm.xlu0 %1475, %v1297
  %v1477 = vpop.permute.xlu0 %1476
  %1478 = vset.pattern.permute.xlu0 0
  %1479 = vperm.xlu0 %1478, %v1298
  %v1480 = vpop.permute.xlu0 %1479
  %1481 = vset.pattern.permute.xlu0 0
  %1482 = vperm.xlu0 %1481, %v1299
  %v1483 = vpop.permute.xlu0 %1482
  %1484 = vset.pattern.permute.xlu0 0
  %1485 = vperm.xlu0 %1484, %v1300
  %v1486 = vpop.permute.xlu0 %1485
  %1487 = vset.pattern.permute.xlu0 0
  %1488 = vperm.xlu0 %1487, %v1301
  %v1489 = vpop.permute.xlu0 %1488
  %1490 = vset.pattern.permute.xlu0 0
  %1491 = vperm.xlu0 %1490, %v1302
  %v1492 = vpop.permute.xlu0 %1491
  %1493 = vset.pattern.permute.xlu0 0
  %1494 = vperm.xlu0 %1493, %v1303
  %v1495 = vpop.permute.xlu0 %1494
  %vm1496 = vcmp.eq.s32.totalorder %v1238, %v1306
  %vm1497 = vcmp.eq.s32.totalorder %v1238, %v1309
  %vm1498 = vcmp.eq.s32.totalorder %v1238, %v1312
  %vm1499 = vcmp.eq.s32.totalorder %v1238, %v1315
  %vm1500 = vcmp.eq.s32.totalorder %v1238, %v1318
  %vm1501 = vcmp.eq.s32.totalorder %v1238, %v1321
  %vm1502 = vcmp.eq.s32.totalorder %v1238, %v1324
  %vm1503 = vcmp.eq.s32.totalorder %v1238, %v1327
  %vm1504 = vcmp.eq.s32.totalorder %v1238, %v1330
  %vm1505 = vcmp.eq.s32.totalorder %v1238, %v1333
  %vm1506 = vcmp.eq.s32.totalorder %v1238, %v1336
  %vm1507 = vcmp.eq.s32.totalorder %v1238, %v1339
  %vm1508 = vcmp.eq.s32.totalorder %v1238, %v1342
  %vm1509 = vcmp.eq.s32.totalorder %v1238, %v1345
  %vm1510 = vcmp.eq.s32.totalorder %v1238, %v1348
  %vm1511 = vcmp.eq.s32.totalorder %v1238, %v1351
  %vm1512 = vcmp.eq.s32.totalorder %v1238, %v1354
  %vm1513 = vcmp.eq.s32.totalorder %v1238, %v1357
  %vm1514 = vcmp.eq.s32.totalorder %v1238, %v1360
  %vm1515 = vcmp.eq.s32.totalorder %v1238, %v1363
  %vm1516 = vcmp.eq.s32.totalorder %v1238, %v1366
  %vm1517 = vcmp.eq.s32.totalorder %v1238, %v1369
  %vm1518 = vcmp.eq.s32.totalorder %v1238, %v1372
  %vm1519 = vcmp.eq.s32.totalorder %v1238, %v1375
  %vm1520 = vcmp.eq.s32.totalorder %v1238, %v1378
  %vm1521 = vcmp.eq.s32.totalorder %v1238, %v1381
  %vm1522 = vcmp.eq.s32.totalorder %v1238, %v1384
  %vm1523 = vcmp.eq.s32.totalorder %v1238, %v1387
  %vm1524 = vcmp.eq.s32.totalorder %v1238, %v1390
  %vm1525 = vcmp.eq.s32.totalorder %v1238, %v1393
  %vm1526 = vcmp.eq.s32.totalorder %v1238, %v1396
  %vm1527 = vcmp.eq.s32.totalorder %v1238, %v1399
  %vm1528 = vcmp.eq.s32.totalorder %v1238, %v1402
  %vm1529 = vcmp.eq.s32.totalorder %v1238, %v1405
  %vm1530 = vcmp.eq.s32.totalorder %v1238, %v1408
  %vm1531 = vcmp.eq.s32.totalorder %v1238, %v1411
  %vm1532 = vcmp.eq.s32.totalorder %v1238, %v1414
  %vm1533 = vcmp.eq.s32.totalorder %v1238, %v1417
  %vm1534 = vcmp.eq.s32.totalorder %v1238, %v1420
  %vm1535 = vcmp.eq.s32.totalorder %v1238, %v1423
  %vm1536 = vcmp.eq.s32.totalorder %v1238, %v1426
  %vm1537 = vcmp.eq.s32.totalorder %v1238, %v1429
  %vm1538 = vcmp.eq.s32.totalorder %v1238, %v1432
  %vm1539 = vcmp.eq.s32.totalorder %v1238, %v1435
  %vm1540 = vcmp.eq.s32.totalorder %v1238, %v1438
  %vm1541 = vcmp.eq.s32.totalorder %v1238, %v1441
  %vm1542 = vcmp.eq.s32.totalorder %v1238, %v1444
  %vm1543 = vcmp.eq.s32.totalorder %v1238, %v1447
  %vm1544 = vcmp.eq.s32.totalorder %v1238, %v1450
  %vm1545 = vcmp.eq.s32.totalorder %v1238, %v1453
  %vm1546 = vcmp.eq.s32.totalorder %v1238, %v1456
  %vm1547 = vcmp.eq.s32.totalorder %v1238, %v1459
  %vm1548 = vcmp.eq.s32.totalorder %v1238, %v1462
  %vm1549 = vcmp.eq.s32.totalorder %v1238, %v1465
  %vm1550 = vcmp.eq.s32.totalorder %v1238, %v1468
  %vm1551 = vcmp.eq.s32.totalorder %v1238, %v1471
  %vm1552 = vcmp.eq.s32.totalorder %v1238, %v1474
  %vm1553 = vcmp.eq.s32.totalorder %v1238, %v1477
  %vm1554 = vcmp.eq.s32.totalorder %v1238, %v1480
  %vm1555 = vcmp.eq.s32.totalorder %v1238, %v1483
  %vm1556 = vcmp.eq.s32.totalorder %v1238, %v1486
  %vm1557 = vcmp.eq.s32.totalorder %v1238, %v1489
  %vm1558 = vcmp.eq.s32.totalorder %v1238, %v1492
  %vm1559 = vcmp.eq.s32.totalorder %v1238, %v1495
  %vm1560 = vmand %vm1496, %vm1239
  %vm1561 = vmand %vm1497, %vm1239
  %vm1562 = vmand %vm1498, %vm1239
  %vm1563 = vmand %vm1499, %vm1239
  %vm1564 = vmand %vm1500, %vm1239
  %vm1565 = vmand %vm1501, %vm1239
  %vm1566 = vmand %vm1502, %vm1239
  %vm1567 = vmand %vm1503, %vm1239
  %vm1568 = vmand %vm1504, %vm1239
  %vm1569 = vmand %vm1505, %vm1239
  %vm1570 = vmand %vm1506, %vm1239
  %vm1571 = vmand %vm1507, %vm1239
  %vm1572 = vmand %vm1508, %vm1239
  %vm1573 = vmand %vm1509, %vm1239
  %vm1574 = vmand %vm1510, %vm1239
  %vm1575 = vmand %vm1511, %vm1239
  %vm1576 = vmand %vm1512, %vm1239
  %vm1577 = vmand %vm1513, %vm1239
  %vm1578 = vmand %vm1514, %vm1239
  %vm1579 = vmand %vm1515, %vm1239
  %vm1580 = vmand %vm1516, %vm1239
  %vm1581 = vmand %vm1517, %vm1239
  %vm1582 = vmand %vm1518, %vm1239
  %vm1583 = vmand %vm1519, %vm1239
  %vm1584 = vmand %vm1520, %vm1239
  %vm1585 = vmand %vm1521, %vm1239
  %vm1586 = vmand %vm1522, %vm1239
  %vm1587 = vmand %vm1523, %vm1239
  %vm1588 = vmand %vm1524, %vm1239
  %vm1589 = vmand %vm1525, %vm1239
  %vm1590 = vmand %vm1526, %vm1239
  %vm1591 = vmand %vm1527, %vm1239
  %vm1592 = vmand %vm1528, %vm1239
  %vm1593 = vmand %vm1529, %vm1239
  %vm1594 = vmand %vm1530, %vm1239
  %vm1595 = vmand %vm1531, %vm1239
  %vm1596 = vmand %vm1532, %vm1239
  %vm1597 = vmand %vm1533, %vm1239
  %vm1598 = vmand %vm1534, %vm1239
  %vm1599 = vmand %vm1535, %vm1239
  %vm1600 = vmand %vm1536, %vm1239
  %vm1601 = vmand %vm1537, %vm1239
  %vm1602 = vmand %vm1538, %vm1239
  %vm1603 = vmand %vm1539, %vm1239
  %vm1604 = vmand %vm1540, %vm1239
  %vm1605 = vmand %vm1541, %vm1239
  %vm1606 = vmand %vm1542, %vm1239
  %vm1607 = vmand %vm1543, %vm1239
  %vm1608 = vmand %vm1544, %vm1239
  %vm1609 = vmand %vm1545, %vm1239
  %vm1610 = vmand %vm1546, %vm1239
  %vm1611 = vmand %vm1547, %vm1239
  %vm1612 = vmand %vm1548, %vm1239
  %vm1613 = vmand %vm1549, %vm1239
  %vm1614 = vmand %vm1550, %vm1239
  %vm1615 = vmand %vm1551, %vm1239
  %vm1616 = vmand %vm1552, %vm1239
  %vm1617 = vmand %vm1553, %vm1239
  %vm1618 = vmand %vm1554, %vm1239
  %vm1619 = vmand %vm1555, %vm1239
  %vm1620 = vmand %vm1556, %vm1239
  %vm1621 = vmand %vm1557, %vm1239
  %vm1622 = vmand %vm1558, %vm1239
  %vm1623 = vmand %vm1559, %vm1239
  %v1624 = vsel %vm1239, %v918, -inf
  %v1625 = vsel %vm1239, %v921, -inf
  %v1626 = vsel %vm1239, %v926, -inf
  %v1627 = vsel %vm1239, %v929, -inf
  %v1628 = vsel %vm1239, %v934, -inf
  %v1629 = vsel %vm1239, %v937, -inf
  %v1630 = vsel %vm1239, %v942, -inf
  %v1631 = vsel %vm1239, %v945, -inf
  %v1632 = vsel %vm1239, %v950, -inf
  %v1633 = vsel %vm1239, %v953, -inf
  %v1634 = vsel %vm1239, %v958, -inf
  %v1635 = vsel %vm1239, %v961, -inf
  %v1636 = vsel %vm1239, %v966, -inf
  %v1637 = vsel %vm1239, %v969, -inf
  %v1638 = vsel %vm1239, %v974, -inf
  %v1639 = vsel %vm1239, %v977, -inf
  %v1640 = vsel %vm1239, %v982, -inf
  %v1641 = vsel %vm1239, %v985, -inf
  %v1642 = vsel %vm1239, %v990, -inf
  %v1643 = vsel %vm1239, %v993, -inf
  %v1644 = vsel %vm1239, %v998, -inf
  %v1645 = vsel %vm1239, %v1001, -inf
  %v1646 = vsel %vm1239, %v1006, -inf
  %v1647 = vsel %vm1239, %v1009, -inf
  %v1648 = vsel %vm1239, %v1014, -inf
  %v1649 = vsel %vm1239, %v1017, -inf
  %v1650 = vsel %vm1239, %v1022, -inf
  %v1651 = vsel %vm1239, %v1025, -inf
  %v1652 = vsel %vm1239, %v1030, -inf
  %v1653 = vsel %vm1239, %v1033, -inf
  %v1654 = vsel %vm1239, %v1038, -inf
  %v1655 = vsel %vm1239, %v1041, -inf
  %v1656 = vsel %vm1239, %v1046, -inf
  %v1657 = vsel %vm1239, %v1049, -inf
  %v1658 = vsel %vm1239, %v1054, -inf
  %v1659 = vsel %vm1239, %v1057, -inf
  %v1660 = vsel %vm1239, %v1062, -inf
  %v1661 = vsel %vm1239, %v1065, -inf
  %v1662 = vsel %vm1239, %v1070, -inf
  %v1663 = vsel %vm1239, %v1073, -inf
  %v1664 = vsel %vm1239, %v1078, -inf
  %v1665 = vsel %vm1239, %v1081, -inf
  %v1666 = vsel %vm1239, %v1086, -inf
  %v1667 = vsel %vm1239, %v1089, -inf
  %v1668 = vsel %vm1239, %v1094, -inf
  %v1669 = vsel %vm1239, %v1097, -inf
  %v1670 = vsel %vm1239, %v1102, -inf
  %v1671 = vsel %vm1239, %v1105, -inf
  %v1672 = vsel %vm1239, %v1110, -inf
  %v1673 = vsel %vm1239, %v1113, -inf
  %v1674 = vsel %vm1239, %v1118, -inf
  %v1675 = vsel %vm1239, %v1121, -inf
  %v1676 = vsel %vm1239, %v1126, -inf
  %v1677 = vsel %vm1239, %v1129, -inf
  %v1678 = vsel %vm1239, %v1134, -inf
  %v1679 = vsel %vm1239, %v1137, -inf
  %v1680 = vsel %vm1239, %v1142, -inf
  %v1681 = vsel %vm1239, %v1145, -inf
  %v1682 = vsel %vm1239, %v1150, -inf
  %v1683 = vsel %vm1239, %v1153, -inf
  %v1684 = vsel %vm1239, %v1158, -inf
  %v1685 = vsel %vm1239, %v1161, -inf
  %v1686 = vsel %vm1239, %v1166, -inf
  %v1687 = vsel %vm1239, %v1169, -inf
  %v1688 = vsel %vm1172, %v1624, -inf
  %1689 = vmax.xlane.f32.xlu0 %v1688
  %v1690 = vpop.xlane.xlu0 %1689
  %v1691 = vsel %vm1172, %v1625, -inf
  %1692 = vmax.xlane.f32.xlu0 %v1691
  %v1693 = vpop.xlane.xlu0 %1692
  %v1694 = vsel %vm1172, %v1626, -inf
  %1695 = vmax.xlane.f32.xlu0 %v1694
  %v1696 = vpop.xlane.xlu0 %1695
  %v1697 = vsel %vm1172, %v1627, -inf
  %1698 = vmax.xlane.f32.xlu0 %v1697
  %v1699 = vpop.xlane.xlu0 %1698
  %v1700 = vsel %vm1172, %v1628, -inf
  %1701 = vmax.xlane.f32.xlu0 %v1700
  %v1702 = vpop.xlane.xlu0 %1701
  %v1703 = vsel %vm1172, %v1629, -inf
  %1704 = vmax.xlane.f32.xlu0 %v1703
  %v1705 = vpop.xlane.xlu0 %1704
  %v1706 = vsel %vm1172, %v1630, -inf
  %1707 = vmax.xlane.f32.xlu0 %v1706
  %v1708 = vpop.xlane.xlu0 %1707
  %v1709 = vsel %vm1172, %v1631, -inf
  %1710 = vmax.xlane.f32.xlu0 %v1709
  %v1711 = vpop.xlane.xlu0 %1710
  %v1712 = vsel %vm1172, %v1632, -inf
  %1713 = vmax.xlane.f32.xlu0 %v1712
  %v1714 = vpop.xlane.xlu0 %1713
  %v1715 = vsel %vm1172, %v1633, -inf
  %1716 = vmax.xlane.f32.xlu0 %v1715
  %v1717 = vpop.xlane.xlu0 %1716
  %v1718 = vsel %vm1172, %v1634, -inf
  %1719 = vmax.xlane.f32.xlu0 %v1718
  %v1720 = vpop.xlane.xlu0 %1719
  %v1721 = vsel %vm1172, %v1635, -inf
  %1722 = vmax.xlane.f32.xlu0 %v1721
  %v1723 = vpop.xlane.xlu0 %1722
  %v1724 = vsel %vm1172, %v1636, -inf
  %1725 = vmax.xlane.f32.xlu0 %v1724
  %v1726 = vpop.xlane.xlu0 %1725
  %v1727 = vsel %vm1172, %v1637, -inf
  %1728 = vmax.xlane.f32.xlu0 %v1727
  %v1729 = vpop.xlane.xlu0 %1728
  %v1730 = vsel %vm1172, %v1638, -inf
  %1731 = vmax.xlane.f32.xlu0 %v1730
  %v1732 = vpop.xlane.xlu0 %1731
  %v1733 = vsel %vm1172, %v1639, -inf
  %1734 = vmax.xlane.f32.xlu0 %v1733
  %v1735 = vpop.xlane.xlu0 %1734
  %v1736 = vsel %vm1172, %v1640, -inf
  %1737 = vmax.xlane.f32.xlu0 %v1736
  %v1738 = vpop.xlane.xlu0 %1737
  %v1739 = vsel %vm1172, %v1641, -inf
  %1740 = vmax.xlane.f32.xlu0 %v1739
  %v1741 = vpop.xlane.xlu0 %1740
  %v1742 = vsel %vm1172, %v1642, -inf
  %1743 = vmax.xlane.f32.xlu0 %v1742
  %v1744 = vpop.xlane.xlu0 %1743
  %v1745 = vsel %vm1172, %v1643, -inf
  %1746 = vmax.xlane.f32.xlu0 %v1745
  %v1747 = vpop.xlane.xlu0 %1746
  %v1748 = vsel %vm1172, %v1644, -inf
  %1749 = vmax.xlane.f32.xlu0 %v1748
  %v1750 = vpop.xlane.xlu0 %1749
  %v1751 = vsel %vm1172, %v1645, -inf
  %1752 = vmax.xlane.f32.xlu0 %v1751
  %v1753 = vpop.xlane.xlu0 %1752
  %v1754 = vsel %vm1172, %v1646, -inf
  %1755 = vmax.xlane.f32.xlu0 %v1754
  %v1756 = vpop.xlane.xlu0 %1755
  %v1757 = vsel %vm1172, %v1647, -inf
  %1758 = vmax.xlane.f32.xlu0 %v1757
  %v1759 = vpop.xlane.xlu0 %1758
  %v1760 = vsel %vm1172, %v1648, -inf
  %1761 = vmax.xlane.f32.xlu0 %v1760
  %v1762 = vpop.xlane.xlu0 %1761
  %v1763 = vsel %vm1172, %v1649, -inf
  %1764 = vmax.xlane.f32.xlu0 %v1763
  %v1765 = vpop.xlane.xlu0 %1764
  %v1766 = vsel %vm1172, %v1650, -inf
  %1767 = vmax.xlane.f32.xlu0 %v1766
  %v1768 = vpop.xlane.xlu0 %1767
  %v1769 = vsel %vm1172, %v1651, -inf
  %1770 = vmax.xlane.f32.xlu0 %v1769
  %v1771 = vpop.xlane.xlu0 %1770
  %v1772 = vsel %vm1172, %v1652, -inf
  %1773 = vmax.xlane.f32.xlu0 %v1772
  %v1774 = vpop.xlane.xlu0 %1773
  %v1775 = vsel %vm1172, %v1653, -inf
  %1776 = vmax.xlane.f32.xlu0 %v1775
  %v1777 = vpop.xlane.xlu0 %1776
  %v1778 = vsel %vm1172, %v1654, -inf
  %1779 = vmax.xlane.f32.xlu0 %v1778
  %v1780 = vpop.xlane.xlu0 %1779
  %v1781 = vsel %vm1172, %v1655, -inf
  %1782 = vmax.xlane.f32.xlu0 %v1781
  %v1783 = vpop.xlane.xlu0 %1782
  %v1784 = vsel %vm1172, %v1656, -inf
  %1785 = vmax.xlane.f32.xlu0 %v1784
  %v1786 = vpop.xlane.xlu0 %1785
  %v1787 = vsel %vm1172, %v1657, -inf
  %1788 = vmax.xlane.f32.xlu0 %v1787
  %v1789 = vpop.xlane.xlu0 %1788
  %v1790 = vsel %vm1172, %v1658, -inf
  %1791 = vmax.xlane.f32.xlu0 %v1790
  %v1792 = vpop.xlane.xlu0 %1791
  %v1793 = vsel %vm1172, %v1659, -inf
  %1794 = vmax.xlane.f32.xlu0 %v1793
  %v1795 = vpop.xlane.xlu0 %1794
  %v1796 = vsel %vm1172, %v1660, -inf
  %1797 = vmax.xlane.f32.xlu0 %v1796
  %v1798 = vpop.xlane.xlu0 %1797
  %v1799 = vsel %vm1172, %v1661, -inf
  %1800 = vmax.xlane.f32.xlu0 %v1799
  %v1801 = vpop.xlane.xlu0 %1800
  %v1802 = vsel %vm1172, %v1662, -inf
  %1803 = vmax.xlane.f32.xlu0 %v1802
  %v1804 = vpop.xlane.xlu0 %1803
  %v1805 = vsel %vm1172, %v1663, -inf
  %1806 = vmax.xlane.f32.xlu0 %v1805
  %v1807 = vpop.xlane.xlu0 %1806
  %v1808 = vsel %vm1172, %v1664, -inf
  %1809 = vmax.xlane.f32.xlu0 %v1808
  %v1810 = vpop.xlane.xlu0 %1809
  %v1811 = vsel %vm1172, %v1665, -inf
  %1812 = vmax.xlane.f32.xlu0 %v1811
  %v1813 = vpop.xlane.xlu0 %1812
  %v1814 = vsel %vm1172, %v1666, -inf
  %1815 = vmax.xlane.f32.xlu0 %v1814
  %v1816 = vpop.xlane.xlu0 %1815
  %v1817 = vsel %vm1172, %v1667, -inf
  %1818 = vmax.xlane.f32.xlu0 %v1817
  %v1819 = vpop.xlane.xlu0 %1818
  %v1820 = vsel %vm1172, %v1668, -inf
  %1821 = vmax.xlane.f32.xlu0 %v1820
  %v1822 = vpop.xlane.xlu0 %1821
  %v1823 = vsel %vm1172, %v1669, -inf
  %1824 = vmax.xlane.f32.xlu0 %v1823
  %v1825 = vpop.xlane.xlu0 %1824
  %v1826 = vsel %vm1172, %v1670, -inf
  %1827 = vmax.xlane.f32.xlu0 %v1826
  %v1828 = vpop.xlane.xlu0 %1827
  %v1829 = vsel %vm1172, %v1671, -inf
  %1830 = vmax.xlane.f32.xlu0 %v1829
  %v1831 = vpop.xlane.xlu0 %1830
  %v1832 = vsel %vm1172, %v1672, -inf
  %1833 = vmax.xlane.f32.xlu0 %v1832
  %v1834 = vpop.xlane.xlu0 %1833
  %v1835 = vsel %vm1172, %v1673, -inf
  %1836 = vmax.xlane.f32.xlu0 %v1835
  %v1837 = vpop.xlane.xlu0 %1836
  %v1838 = vsel %vm1172, %v1674, -inf
  %1839 = vmax.xlane.f32.xlu0 %v1838
  %v1840 = vpop.xlane.xlu0 %1839
  %v1841 = vsel %vm1172, %v1675, -inf
  %1842 = vmax.xlane.f32.xlu0 %v1841
  %v1843 = vpop.xlane.xlu0 %1842
  %v1844 = vsel %vm1172, %v1676, -inf
  %1845 = vmax.xlane.f32.xlu0 %v1844
  %v1846 = vpop.xlane.xlu0 %1845
  %v1847 = vsel %vm1172, %v1677, -inf
  %1848 = vmax.xlane.f32.xlu0 %v1847
  %v1849 = vpop.xlane.xlu0 %1848
  %v1850 = vsel %vm1172, %v1678, -inf
  %1851 = vmax.xlane.f32.xlu0 %v1850
  %v1852 = vpop.xlane.xlu0 %1851
  %v1853 = vsel %vm1172, %v1679, -inf
  %1854 = vmax.xlane.f32.xlu0 %v1853
  %v1855 = vpop.xlane.xlu0 %1854
  %v1856 = vsel %vm1172, %v1680, -inf
  %1857 = vmax.xlane.f32.xlu0 %v1856
  %v1858 = vpop.xlane.xlu0 %1857
  %v1859 = vsel %vm1172, %v1681, -inf
  %1860 = vmax.xlane.f32.xlu0 %v1859
  %v1861 = vpop.xlane.xlu0 %1860
  %v1862 = vsel %vm1172, %v1682, -inf
  %1863 = vmax.xlane.f32.xlu0 %v1862
  %v1864 = vpop.xlane.xlu0 %1863
  %v1865 = vsel %vm1172, %v1683, -inf
  %1866 = vmax.xlane.f32.xlu0 %v1865
  %v1867 = vpop.xlane.xlu0 %1866
  %v1868 = vsel %vm1172, %v1684, -inf
  %1869 = vmax.xlane.f32.xlu0 %v1868
  %v1870 = vpop.xlane.xlu0 %1869
  %v1871 = vsel %vm1172, %v1685, -inf
  %1872 = vmax.xlane.f32.xlu0 %v1871
  %v1873 = vpop.xlane.xlu0 %1872
  %v1874 = vsel %vm1172, %v1686, -inf
  %1875 = vmax.xlane.f32.xlu0 %v1874
  %v1876 = vpop.xlane.xlu0 %1875
  %v1877 = vsel %vm1172, %v1687, -inf
  %1878 = vmax.xlane.f32.xlu0 %v1877
  %v1879 = vpop.xlane.xlu0 %1878
  %v1880 = vsub.f32 %v918, %v1690
  %v1881 = vsub.f32 %v921, %v1693
  %v1882 = vsub.f32 %v926, %v1696
  %v1883 = vsub.f32 %v929, %v1699
  %v1884 = vsub.f32 %v934, %v1702
  %v1885 = vsub.f32 %v937, %v1705
  %v1886 = vsub.f32 %v942, %v1708
  %v1887 = vsub.f32 %v945, %v1711
  %v1888 = vsub.f32 %v950, %v1714
  %v1889 = vsub.f32 %v953, %v1717
  %v1890 = vsub.f32 %v958, %v1720
  %v1891 = vsub.f32 %v961, %v1723
  %v1892 = vsub.f32 %v966, %v1726
  %v1893 = vsub.f32 %v969, %v1729
  %v1894 = vsub.f32 %v974, %v1732
  %v1895 = vsub.f32 %v977, %v1735
  %v1896 = vsub.f32 %v982, %v1738
  %v1897 = vsub.f32 %v985, %v1741
  %v1898 = vsub.f32 %v990, %v1744
  %v1899 = vsub.f32 %v993, %v1747
  %v1900 = vsub.f32 %v998, %v1750
  %v1901 = vsub.f32 %v1001, %v1753
  %v1902 = vsub.f32 %v1006, %v1756
  %v1903 = vsub.f32 %v1009, %v1759
  %v1904 = vsub.f32 %v1014, %v1762
  %v1905 = vsub.f32 %v1017, %v1765
  %v1906 = vsub.f32 %v1022, %v1768
  %v1907 = vsub.f32 %v1025, %v1771
  %v1908 = vsub.f32 %v1030, %v1774
  %v1909 = vsub.f32 %v1033, %v1777
  %v1910 = vsub.f32 %v1038, %v1780
  %v1911 = vsub.f32 %v1041, %v1783
  %v1912 = vsub.f32 %v1046, %v1786
  %v1913 = vsub.f32 %v1049, %v1789
  %v1914 = vsub.f32 %v1054, %v1792
  %v1915 = vsub.f32 %v1057, %v1795
  %v1916 = vsub.f32 %v1062, %v1798
  %v1917 = vsub.f32 %v1065, %v1801
  %v1918 = vsub.f32 %v1070, %v1804
  %v1919 = vsub.f32 %v1073, %v1807
  %v1920 = vsub.f32 %v1078, %v1810
  %v1921 = vsub.f32 %v1081, %v1813
  %v1922 = vsub.f32 %v1086, %v1816
  %v1923 = vsub.f32 %v1089, %v1819
  %v1924 = vsub.f32 %v1094, %v1822
  %v1925 = vsub.f32 %v1097, %v1825
  %v1926 = vsub.f32 %v1102, %v1828
  %v1927 = vsub.f32 %v1105, %v1831
  %v1928 = vsub.f32 %v1110, %v1834
  %v1929 = vsub.f32 %v1113, %v1837
  %v1930 = vsub.f32 %v1118, %v1840
  %v1931 = vsub.f32 %v1121, %v1843
  %v1932 = vsub.f32 %v1126, %v1846
  %v1933 = vsub.f32 %v1129, %v1849
  %v1934 = vsub.f32 %v1134, %v1852
  %v1935 = vsub.f32 %v1137, %v1855
  %v1936 = vsub.f32 %v1142, %v1858
  %v1937 = vsub.f32 %v1145, %v1861
  %v1938 = vsub.f32 %v1150, %v1864
  %v1939 = vsub.f32 %v1153, %v1867
  %v1940 = vsub.f32 %v1158, %v1870
  %v1941 = vsub.f32 %v1161, %v1873
  %v1942 = vsub.f32 %v1166, %v1876
  %v1943 = vsub.f32 %v1169, %v1879
  %v1944 = vsel %vm1239, %v1880, -inf
  %v1945 = vsel %vm1239, %v1881, -inf
  %v1946 = vsel %vm1239, %v1882, -inf
  %v1947 = vsel %vm1239, %v1883, -inf
  %v1948 = vsel %vm1239, %v1884, -inf
  %v1949 = vsel %vm1239, %v1885, -inf
  %v1950 = vsel %vm1239, %v1886, -inf
  %v1951 = vsel %vm1239, %v1887, -inf
  %v1952 = vsel %vm1239, %v1888, -inf
  %v1953 = vsel %vm1239, %v1889, -inf
  %v1954 = vsel %vm1239, %v1890, -inf
  %v1955 = vsel %vm1239, %v1891, -inf
  %v1956 = vsel %vm1239, %v1892, -inf
  %v1957 = vsel %vm1239, %v1893, -inf
  %v1958 = vsel %vm1239, %v1894, -inf
  %v1959 = vsel %vm1239, %v1895, -inf
  %v1960 = vsel %vm1239, %v1896, -inf
  %v1961 = vsel %vm1239, %v1897, -inf
  %v1962 = vsel %vm1239, %v1898, -inf
  %v1963 = vsel %vm1239, %v1899, -inf
  %v1964 = vsel %vm1239, %v1900, -inf
  %v1965 = vsel %vm1239, %v1901, -inf
  %v1966 = vsel %vm1239, %v1902, -inf
  %v1967 = vsel %vm1239, %v1903, -inf
  %v1968 = vsel %vm1239, %v1904, -inf
  %v1969 = vsel %vm1239, %v1905, -inf
  %v1970 = vsel %vm1239, %v1906, -inf
  %v1971 = vsel %vm1239, %v1907, -inf
  %v1972 = vsel %vm1239, %v1908, -inf
  %v1973 = vsel %vm1239, %v1909, -inf
  %v1974 = vsel %vm1239, %v1910, -inf
  %v1975 = vsel %vm1239, %v1911, -inf
  %v1976 = vsel %vm1239, %v1912, -inf
  %v1977 = vsel %vm1239, %v1913, -inf
  %v1978 = vsel %vm1239, %v1914, -inf
  %v1979 = vsel %vm1239, %v1915, -inf
  %v1980 = vsel %vm1239, %v1916, -inf
  %v1981 = vsel %vm1239, %v1917, -inf
  %v1982 = vsel %vm1239, %v1918, -inf
  %v1983 = vsel %vm1239, %v1919, -inf
  %v1984 = vsel %vm1239, %v1920, -inf
  %v1985 = vsel %vm1239, %v1921, -inf
  %v1986 = vsel %vm1239, %v1922, -inf
  %v1987 = vsel %vm1239, %v1923, -inf
  %v1988 = vsel %vm1239, %v1924, -inf
  %v1989 = vsel %vm1239, %v1925, -inf
  %v1990 = vsel %vm1239, %v1926, -inf
  %v1991 = vsel %vm1239, %v1927, -inf
  %v1992 = vsel %vm1239, %v1928, -inf
  %v1993 = vsel %vm1239, %v1929, -inf
  %v1994 = vsel %vm1239, %v1930, -inf
  %v1995 = vsel %vm1239, %v1931, -inf
  %v1996 = vsel %vm1239, %v1932, -inf
  %v1997 = vsel %vm1239, %v1933, -inf
  %v1998 = vsel %vm1239, %v1934, -inf
  %v1999 = vsel %vm1239, %v1935, -inf
  %v2000 = vsel %vm1239, %v1936, -inf
  %v2001 = vsel %vm1239, %v1937, -inf
  %v2002 = vsel %vm1239, %v1938, -inf
  %v2003 = vsel %vm1239, %v1939, -inf
  %v2004 = vsel %vm1239, %v1940, -inf
  %v2005 = vsel %vm1239, %v1941, -inf
  %v2006 = vsel %vm1239, %v1942, -inf
  %v2007 = vsel %vm1239, %v1943, -inf
  %v2008 = vmul.f32 %v1944, 1.442695
  %v2009 = vpow.pop %v2008
  %v2010 = vmul.f32 %v1945, 1.442695
  %v2011 = vpow.pop %v2010
  %v2012 = vmul.f32 %v1946, 1.442695
  %v2013 = vpow.pop %v2012
  %v2014 = vmul.f32 %v1947, 1.442695
  %v2015 = vpow.pop %v2014
  %v2016 = vmul.f32 %v1948, 1.442695
  %v2017 = vpow.pop %v2016
  %v2018 = vmul.f32 %v1949, 1.442695
  %v2019 = vpow.pop %v2018
  %v2020 = vmul.f32 %v1950, 1.442695
  %v2021 = vpow.pop %v2020
  %v2022 = vmul.f32 %v1951, 1.442695
  %v2023 = vpow.pop %v2022
  %v2024 = vmul.f32 %v1952, 1.442695
  %v2025 = vpow.pop %v2024
  %v2026 = vmul.f32 %v1953, 1.442695
  %v2027 = vpow.pop %v2026
  %v2028 = vmul.f32 %v1954, 1.442695
  %v2029 = vpow.pop %v2028
  %v2030 = vmul.f32 %v1955, 1.442695
  %v2031 = vpow.pop %v2030
  %v2032 = vmul.f32 %v1956, 1.442695
  %v2033 = vpow.pop %v2032
  %v2034 = vmul.f32 %v1957, 1.442695
  %v2035 = vpow.pop %v2034
  %v2036 = vmul.f32 %v1958, 1.442695
  %v2037 = vpow.pop %v2036
  %v2038 = vmul.f32 %v1959, 1.442695
  %v2039 = vpow.pop %v2038
  %v2040 = vmul.f32 %v1960, 1.442695
  %v2041 = vpow.pop %v2040
  %v2042 = vmul.f32 %v1961, 1.442695
  %v2043 = vpow.pop %v2042
  %v2044 = vmul.f32 %v1962, 1.442695
  %v2045 = vpow.pop %v2044
  %v2046 = vmul.f32 %v1963, 1.442695
  %v2047 = vpow.pop %v2046
  %v2048 = vmul.f32 %v1964, 1.442695
  %v2049 = vpow.pop %v2048
  %v2050 = vmul.f32 %v1965, 1.442695
  %v2051 = vpow.pop %v2050
  %v2052 = vmul.f32 %v1966, 1.442695
  %v2053 = vpow.pop %v2052
  %v2054 = vmul.f32 %v1967, 1.442695
  %v2055 = vpow.pop %v2054
  %v2056 = vmul.f32 %v1968, 1.442695
  %v2057 = vpow.pop %v2056
  %v2058 = vmul.f32 %v1969, 1.442695
  %v2059 = vpow.pop %v2058
  %v2060 = vmul.f32 %v1970, 1.442695
  %v2061 = vpow.pop %v2060
  %v2062 = vmul.f32 %v1971, 1.442695
  %v2063 = vpow.pop %v2062
  %v2064 = vmul.f32 %v1972, 1.442695
  %v2065 = vpow.pop %v2064
  %v2066 = vmul.f32 %v1973, 1.442695
  %v2067 = vpow.pop %v2066
  %v2068 = vmul.f32 %v1974, 1.442695
  %v2069 = vpow.pop %v2068
  %v2070 = vmul.f32 %v1975, 1.442695
  %v2071 = vpow.pop %v2070
  %v2072 = vmul.f32 %v1976, 1.442695
  %v2073 = vpow.pop %v2072
  %v2074 = vmul.f32 %v1977, 1.442695
  %v2075 = vpow.pop %v2074
  %v2076 = vmul.f32 %v1978, 1.442695
  %v2077 = vpow.pop %v2076
  %v2078 = vmul.f32 %v1979, 1.442695
  %v2079 = vpow.pop %v2078
  %v2080 = vmul.f32 %v1980, 1.442695
  %v2081 = vpow.pop %v2080
  %v2082 = vmul.f32 %v1981, 1.442695
  %v2083 = vpow.pop %v2082
  %v2084 = vmul.f32 %v1982, 1.442695
  %v2085 = vpow.pop %v2084
  %v2086 = vmul.f32 %v1983, 1.442695
  %v2087 = vpow.pop %v2086
  %v2088 = vmul.f32 %v1984, 1.442695
  %v2089 = vpow.pop %v2088
  %v2090 = vmul.f32 %v1985, 1.442695
  %v2091 = vpow.pop %v2090
  %v2092 = vmul.f32 %v1986, 1.442695
  %v2093 = vpow.pop %v2092
  %v2094 = vmul.f32 %v1987, 1.442695
  %v2095 = vpow.pop %v2094
  %v2096 = vmul.f32 %v1988, 1.442695
  %v2097 = vpow.pop %v2096
  %v2098 = vmul.f32 %v1989, 1.442695
  %v2099 = vpow.pop %v2098
  %v2100 = vmul.f32 %v1990, 1.442695
  %v2101 = vpow.pop %v2100
  %v2102 = vmul.f32 %v1991, 1.442695
  %v2103 = vpow.pop %v2102
  %v2104 = vmul.f32 %v1992, 1.442695
  %v2105 = vpow.pop %v2104
  %v2106 = vmul.f32 %v1993, 1.442695
  %v2107 = vpow.pop %v2106
  %v2108 = vmul.f32 %v1994, 1.442695
  %v2109 = vpow.pop %v2108
  %v2110 = vmul.f32 %v1995, 1.442695
  %v2111 = vpow.pop %v2110
  %v2112 = vmul.f32 %v1996, 1.442695
  %v2113 = vpow.pop %v2112
  %v2114 = vmul.f32 %v1997, 1.442695
  %v2115 = vpow.pop %v2114
  %v2116 = vmul.f32 %v1998, 1.442695
  %v2117 = vpow.pop %v2116
  %v2118 = vmul.f32 %v1999, 1.442695
  %v2119 = vpow.pop %v2118
  %v2120 = vmul.f32 %v2000, 1.442695
  %v2121 = vpow.pop %v2120
  %v2122 = vmul.f32 %v2001, 1.442695
  %v2123 = vpow.pop %v2122
  %v2124 = vmul.f32 %v2002, 1.442695
  %v2125 = vpow.pop %v2124
  %v2126 = vmul.f32 %v2003, 1.442695
  %v2127 = vpow.pop %v2126
  %v2128 = vmul.f32 %v2004, 1.442695
  %v2129 = vpow.pop %v2128
  %v2130 = vmul.f32 %v2005, 1.442695
  %v2131 = vpow.pop %v2130
  %v2132 = vmul.f32 %v2006, 1.442695
  %v2133 = vpow.pop %v2132
  %v2134 = vmul.f32 %v2007, 1.442695
  %v2135 = vpow.pop %v2134
  %v2136 = vsel %vm1172, %v2009, 0.0
  %2137 = vadd.xlane.f32.xlu0 %v2136
  %v2138 = vpop.xlane.xlu0 %2137
  %v2139 = vsel %vm1172, %v2011, 0.0
  %2140 = vadd.xlane.f32.xlu0 %v2139
  %v2141 = vpop.xlane.xlu0 %2140
  %v2142 = vsel %vm1172, %v2013, 0.0
  %2143 = vadd.xlane.f32.xlu0 %v2142
  %v2144 = vpop.xlane.xlu0 %2143
  %v2145 = vsel %vm1172, %v2015, 0.0
  %2146 = vadd.xlane.f32.xlu0 %v2145
  %v2147 = vpop.xlane.xlu0 %2146
  %v2148 = vsel %vm1172, %v2017, 0.0
  %2149 = vadd.xlane.f32.xlu0 %v2148
  %v2150 = vpop.xlane.xlu0 %2149
  %v2151 = vsel %vm1172, %v2019, 0.0
  %2152 = vadd.xlane.f32.xlu0 %v2151
  %v2153 = vpop.xlane.xlu0 %2152
  %v2154 = vsel %vm1172, %v2021, 0.0
  %2155 = vadd.xlane.f32.xlu0 %v2154
  %v2156 = vpop.xlane.xlu0 %2155
  %v2157 = vsel %vm1172, %v2023, 0.0
  %2158 = vadd.xlane.f32.xlu0 %v2157
  %v2159 = vpop.xlane.xlu0 %2158
  %v2160 = vsel %vm1172, %v2025, 0.0
  %2161 = vadd.xlane.f32.xlu0 %v2160
  %v2162 = vpop.xlane.xlu0 %2161
  %v2163 = vsel %vm1172, %v2027, 0.0
  %2164 = vadd.xlane.f32.xlu0 %v2163
  %v2165 = vpop.xlane.xlu0 %2164
  %v2166 = vsel %vm1172, %v2029, 0.0
  %2167 = vadd.xlane.f32.xlu0 %v2166
  %v2168 = vpop.xlane.xlu0 %2167
  %v2169 = vsel %vm1172, %v2031, 0.0
  %2170 = vadd.xlane.f32.xlu0 %v2169
  %v2171 = vpop.xlane.xlu0 %2170
  %v2172 = vsel %vm1172, %v2033, 0.0
  %2173 = vadd.xlane.f32.xlu0 %v2172
  %v2174 = vpop.xlane.xlu0 %2173
  %v2175 = vsel %vm1172, %v2035, 0.0
  %2176 = vadd.xlane.f32.xlu0 %v2175
  %v2177 = vpop.xlane.xlu0 %2176
  %v2178 = vsel %vm1172, %v2037, 0.0
  %2179 = vadd.xlane.f32.xlu0 %v2178
  %v2180 = vpop.xlane.xlu0 %2179
  %v2181 = vsel %vm1172, %v2039, 0.0
  %2182 = vadd.xlane.f32.xlu0 %v2181
  %v2183 = vpop.xlane.xlu0 %2182
  %v2184 = vsel %vm1172, %v2041, 0.0
  %2185 = vadd.xlane.f32.xlu0 %v2184
  %v2186 = vpop.xlane.xlu0 %2185
  %v2187 = vsel %vm1172, %v2043, 0.0
  %2188 = vadd.xlane.f32.xlu0 %v2187
  %v2189 = vpop.xlane.xlu0 %2188
  %v2190 = vsel %vm1172, %v2045, 0.0
  %2191 = vadd.xlane.f32.xlu0 %v2190
  %v2192 = vpop.xlane.xlu0 %2191
  %v2193 = vsel %vm1172, %v2047, 0.0
  %2194 = vadd.xlane.f32.xlu0 %v2193
  %v2195 = vpop.xlane.xlu0 %2194
  %v2196 = vsel %vm1172, %v2049, 0.0
  %2197 = vadd.xlane.f32.xlu0 %v2196
  %v2198 = vpop.xlane.xlu0 %2197
  %v2199 = vsel %vm1172, %v2051, 0.0
  %2200 = vadd.xlane.f32.xlu0 %v2199
  %v2201 = vpop.xlane.xlu0 %2200
  %v2202 = vsel %vm1172, %v2053, 0.0
  %2203 = vadd.xlane.f32.xlu0 %v2202
  %v2204 = vpop.xlane.xlu0 %2203
  %v2205 = vsel %vm1172, %v2055, 0.0
  %2206 = vadd.xlane.f32.xlu0 %v2205
  %v2207 = vpop.xlane.xlu0 %2206
  %v2208 = vsel %vm1172, %v2057, 0.0
  %2209 = vadd.xlane.f32.xlu0 %v2208
  %v2210 = vpop.xlane.xlu0 %2209
  %v2211 = vsel %vm1172, %v2059, 0.0
  %2212 = vadd.xlane.f32.xlu0 %v2211
  %v2213 = vpop.xlane.xlu0 %2212
  %v2214 = vsel %vm1172, %v2061, 0.0
  %2215 = vadd.xlane.f32.xlu0 %v2214
  %v2216 = vpop.xlane.xlu0 %2215
  %v2217 = vsel %vm1172, %v2063, 0.0
  %2218 = vadd.xlane.f32.xlu0 %v2217
  %v2219 = vpop.xlane.xlu0 %2218
  %v2220 = vsel %vm1172, %v2065, 0.0
  %2221 = vadd.xlane.f32.xlu0 %v2220
  %v2222 = vpop.xlane.xlu0 %2221
  %v2223 = vsel %vm1172, %v2067, 0.0
  %2224 = vadd.xlane.f32.xlu0 %v2223
  %v2225 = vpop.xlane.xlu0 %2224
  %v2226 = vsel %vm1172, %v2069, 0.0
  %2227 = vadd.xlane.f32.xlu0 %v2226
  %v2228 = vpop.xlane.xlu0 %2227
  %v2229 = vsel %vm1172, %v2071, 0.0
  %2230 = vadd.xlane.f32.xlu0 %v2229
  %v2231 = vpop.xlane.xlu0 %2230
  %v2232 = vsel %vm1172, %v2073, 0.0
  %2233 = vadd.xlane.f32.xlu0 %v2232
  %v2234 = vpop.xlane.xlu0 %2233
  %v2235 = vsel %vm1172, %v2075, 0.0
  %2236 = vadd.xlane.f32.xlu0 %v2235
  %v2237 = vpop.xlane.xlu0 %2236
  %v2238 = vsel %vm1172, %v2077, 0.0
  %2239 = vadd.xlane.f32.xlu0 %v2238
  %v2240 = vpop.xlane.xlu0 %2239
  %v2241 = vsel %vm1172, %v2079, 0.0
  %2242 = vadd.xlane.f32.xlu0 %v2241
  %v2243 = vpop.xlane.xlu0 %2242
  %v2244 = vsel %vm1172, %v2081, 0.0
  %2245 = vadd.xlane.f32.xlu0 %v2244
  %v2246 = vpop.xlane.xlu0 %2245
  %v2247 = vsel %vm1172, %v2083, 0.0
  %2248 = vadd.xlane.f32.xlu0 %v2247
  %v2249 = vpop.xlane.xlu0 %2248
  %v2250 = vsel %vm1172, %v2085, 0.0
  %2251 = vadd.xlane.f32.xlu0 %v2250
  %v2252 = vpop.xlane.xlu0 %2251
  %v2253 = vsel %vm1172, %v2087, 0.0
  %2254 = vadd.xlane.f32.xlu0 %v2253
  %v2255 = vpop.xlane.xlu0 %2254
  %v2256 = vsel %vm1172, %v2089, 0.0
  %2257 = vadd.xlane.f32.xlu0 %v2256
  %v2258 = vpop.xlane.xlu0 %2257
  %v2259 = vsel %vm1172, %v2091, 0.0
  %2260 = vadd.xlane.f32.xlu0 %v2259
  %v2261 = vpop.xlane.xlu0 %2260
  %v2262 = vsel %vm1172, %v2093, 0.0
  %2263 = vadd.xlane.f32.xlu0 %v2262
  %v2264 = vpop.xlane.xlu0 %2263
  %v2265 = vsel %vm1172, %v2095, 0.0
  %2266 = vadd.xlane.f32.xlu0 %v2265
  %v2267 = vpop.xlane.xlu0 %2266
  %v2268 = vsel %vm1172, %v2097, 0.0
  %2269 = vadd.xlane.f32.xlu0 %v2268
  %v2270 = vpop.xlane.xlu0 %2269
  %v2271 = vsel %vm1172, %v2099, 0.0
  %2272 = vadd.xlane.f32.xlu0 %v2271
  %v2273 = vpop.xlane.xlu0 %2272
  %v2274 = vsel %vm1172, %v2101, 0.0
  %2275 = vadd.xlane.f32.xlu0 %v2274
  %v2276 = vpop.xlane.xlu0 %2275
  %v2277 = vsel %vm1172, %v2103, 0.0
  %2278 = vadd.xlane.f32.xlu0 %v2277
  %v2279 = vpop.xlane.xlu0 %2278
  %v2280 = vsel %vm1172, %v2105, 0.0
  %2281 = vadd.xlane.f32.xlu0 %v2280
  %v2282 = vpop.xlane.xlu0 %2281
  %v2283 = vsel %vm1172, %v2107, 0.0
  %2284 = vadd.xlane.f32.xlu0 %v2283
  %v2285 = vpop.xlane.xlu0 %2284
  %v2286 = vsel %vm1172, %v2109, 0.0
  %2287 = vadd.xlane.f32.xlu0 %v2286
  %v2288 = vpop.xlane.xlu0 %2287
  %v2289 = vsel %vm1172, %v2111, 0.0
  %2290 = vadd.xlane.f32.xlu0 %v2289
  %v2291 = vpop.xlane.xlu0 %2290
  %v2292 = vsel %vm1172, %v2113, 0.0
  %2293 = vadd.xlane.f32.xlu0 %v2292
  %v2294 = vpop.xlane.xlu0 %2293
  %v2295 = vsel %vm1172, %v2115, 0.0
  %2296 = vadd.xlane.f32.xlu0 %v2295
  %v2297 = vpop.xlane.xlu0 %2296
  %v2298 = vsel %vm1172, %v2117, 0.0
  %2299 = vadd.xlane.f32.xlu0 %v2298
  %v2300 = vpop.xlane.xlu0 %2299
  %v2301 = vsel %vm1172, %v2119, 0.0
  %2302 = vadd.xlane.f32.xlu0 %v2301
  %v2303 = vpop.xlane.xlu0 %2302
  %v2304 = vsel %vm1172, %v2121, 0.0
  %2305 = vadd.xlane.f32.xlu0 %v2304
  %v2306 = vpop.xlane.xlu0 %2305
  %v2307 = vsel %vm1172, %v2123, 0.0
  %2308 = vadd.xlane.f32.xlu0 %v2307
  %v2309 = vpop.xlane.xlu0 %2308
  %v2310 = vsel %vm1172, %v2125, 0.0
  %2311 = vadd.xlane.f32.xlu0 %v2310
  %v2312 = vpop.xlane.xlu0 %2311
  %v2313 = vsel %vm1172, %v2127, 0.0
  %2314 = vadd.xlane.f32.xlu0 %v2313
  %v2315 = vpop.xlane.xlu0 %2314
  %v2316 = vsel %vm1172, %v2129, 0.0
  %2317 = vadd.xlane.f32.xlu0 %v2316
  %v2318 = vpop.xlane.xlu0 %2317
  %v2319 = vsel %vm1172, %v2131, 0.0
  %2320 = vadd.xlane.f32.xlu0 %v2319
  %v2321 = vpop.xlane.xlu0 %2320
  %v2322 = vsel %vm1172, %v2133, 0.0
  %2323 = vadd.xlane.f32.xlu0 %v2322
  %v2324 = vpop.xlane.xlu0 %2323
  %v2325 = vsel %vm1172, %v2135, 0.0
  %2326 = vadd.xlane.f32.xlu0 %v2325
  %v2327 = vpop.xlane.xlu0 %2326
  %v2328 = vlog2.pop %v2138
  %v2329 = vmul.f32 %v2328, 0.6931472
  %v2330 = vlog2.pop %v2141
  %v2331 = vmul.f32 %v2330, 0.6931472
  %v2332 = vlog2.pop %v2144
  %v2333 = vmul.f32 %v2332, 0.6931472
  %v2334 = vlog2.pop %v2147
  %v2335 = vmul.f32 %v2334, 0.6931472
  %v2336 = vlog2.pop %v2150
  %v2337 = vmul.f32 %v2336, 0.6931472
  %v2338 = vlog2.pop %v2153
  %v2339 = vmul.f32 %v2338, 0.6931472
  %v2340 = vlog2.pop %v2156
  %v2341 = vmul.f32 %v2340, 0.6931472
  %v2342 = vlog2.pop %v2159
  %v2343 = vmul.f32 %v2342, 0.6931472
  %v2344 = vlog2.pop %v2162
  %v2345 = vmul.f32 %v2344, 0.6931472
  %v2346 = vlog2.pop %v2165
  %v2347 = vmul.f32 %v2346, 0.6931472
  %v2348 = vlog2.pop %v2168
  %v2349 = vmul.f32 %v2348, 0.6931472
  %v2350 = vlog2.pop %v2171
  %v2351 = vmul.f32 %v2350, 0.6931472
  %v2352 = vlog2.pop %v2174
  %v2353 = vmul.f32 %v2352, 0.6931472
  %v2354 = vlog2.pop %v2177
  %v2355 = vmul.f32 %v2354, 0.6931472
  %v2356 = vlog2.pop %v2180
  %v2357 = vmul.f32 %v2356, 0.6931472
  %v2358 = vlog2.pop %v2183
  %v2359 = vmul.f32 %v2358, 0.6931472
  %v2360 = vlog2.pop %v2186
  %v2361 = vmul.f32 %v2360, 0.6931472
  %v2362 = vlog2.pop %v2189
  %v2363 = vmul.f32 %v2362, 0.6931472
  %v2364 = vlog2.pop %v2192
  %v2365 = vmul.f32 %v2364, 0.6931472
  %v2366 = vlog2.pop %v2195
  %v2367 = vmul.f32 %v2366, 0.6931472
  %v2368 = vlog2.pop %v2198
  %v2369 = vmul.f32 %v2368, 0.6931472
  %v2370 = vlog2.pop %v2201
  %v2371 = vmul.f32 %v2370, 0.6931472
  %v2372 = vlog2.pop %v2204
  %v2373 = vmul.f32 %v2372, 0.6931472
  %v2374 = vlog2.pop %v2207
  %v2375 = vmul.f32 %v2374, 0.6931472
  %v2376 = vlog2.pop %v2210
  %v2377 = vmul.f32 %v2376, 0.6931472
  %v2378 = vlog2.pop %v2213
  %v2379 = vmul.f32 %v2378, 0.6931472
  %v2380 = vlog2.pop %v2216
  %v2381 = vmul.f32 %v2380, 0.6931472
  %v2382 = vlog2.pop %v2219
  %v2383 = vmul.f32 %v2382, 0.6931472
  %v2384 = vlog2.pop %v2222
  %v2385 = vmul.f32 %v2384, 0.6931472
  %v2386 = vlog2.pop %v2225
  %v2387 = vmul.f32 %v2386, 0.6931472
  %v2388 = vlog2.pop %v2228
  %v2389 = vmul.f32 %v2388, 0.6931472
  %v2390 = vlog2.pop %v2231
  %v2391 = vmul.f32 %v2390, 0.6931472
  %v2392 = vlog2.pop %v2234
  %v2393 = vmul.f32 %v2392, 0.6931472
  %v2394 = vlog2.pop %v2237
  %v2395 = vmul.f32 %v2394, 0.6931472
  %v2396 = vlog2.pop %v2240
  %v2397 = vmul.f32 %v2396, 0.6931472
  %v2398 = vlog2.pop %v2243
  %v2399 = vmul.f32 %v2398, 0.6931472
  %v2400 = vlog2.pop %v2246
  %v2401 = vmul.f32 %v2400, 0.6931472
  %v2402 = vlog2.pop %v2249
  %v2403 = vmul.f32 %v2402, 0.6931472
  %v2404 = vlog2.pop %v2252
  %v2405 = vmul.f32 %v2404, 0.6931472
  %v2406 = vlog2.pop %v2255
  %v2407 = vmul.f32 %v2406, 0.6931472
  %v2408 = vlog2.pop %v2258
  %v2409 = vmul.f32 %v2408, 0.6931472
  %v2410 = vlog2.pop %v2261
  %v2411 = vmul.f32 %v2410, 0.6931472
  %v2412 = vlog2.pop %v2264
  %v2413 = vmul.f32 %v2412, 0.6931472
  %v2414 = vlog2.pop %v2267
  %v2415 = vmul.f32 %v2414, 0.6931472
  %v2416 = vlog2.pop %v2270
  %v2417 = vmul.f32 %v2416, 0.6931472
  %v2418 = vlog2.pop %v2273
  %v2419 = vmul.f32 %v2418, 0.6931472
  %v2420 = vlog2.pop %v2276
  %v2421 = vmul.f32 %v2420, 0.6931472
  %v2422 = vlog2.pop %v2279
  %v2423 = vmul.f32 %v2422, 0.6931472
  %v2424 = vlog2.pop %v2282
  %v2425 = vmul.f32 %v2424, 0.6931472
  %v2426 = vlog2.pop %v2285
  %v2427 = vmul.f32 %v2426, 0.6931472
  %v2428 = vlog2.pop %v2288
  %v2429 = vmul.f32 %v2428, 0.6931472
  %v2430 = vlog2.pop %v2291
  %v2431 = vmul.f32 %v2430, 0.6931472
  %v2432 = vlog2.pop %v2294
  %v2433 = vmul.f32 %v2432, 0.6931472
  %v2434 = vlog2.pop %v2297
  %v2435 = vmul.f32 %v2434, 0.6931472
  %v2436 = vlog2.pop %v2300
  %v2437 = vmul.f32 %v2436, 0.6931472
  %v2438 = vlog2.pop %v2303
  %v2439 = vmul.f32 %v2438, 0.6931472
  %v2440 = vlog2.pop %v2306
  %v2441 = vmul.f32 %v2440, 0.6931472
  %v2442 = vlog2.pop %v2309
  %v2443 = vmul.f32 %v2442, 0.6931472
  %v2444 = vlog2.pop %v2312
  %v2445 = vmul.f32 %v2444, 0.6931472
  %v2446 = vlog2.pop %v2315
  %v2447 = vmul.f32 %v2446, 0.6931472
  %v2448 = vlog2.pop %v2318
  %v2449 = vmul.f32 %v2448, 0.6931472
  %v2450 = vlog2.pop %v2321
  %v2451 = vmul.f32 %v2450, 0.6931472
  %v2452 = vlog2.pop %v2324
  %v2453 = vmul.f32 %v2452, 0.6931472
  %v2454 = vlog2.pop %v2327
  %v2455 = vmul.f32 %v2454, 0.6931472
  %v2456 = vadd.f32 %v1690, %v2329
  %v2457 = vadd.f32 %v1693, %v2331
  %v2458 = vadd.f32 %v1696, %v2333
  %v2459 = vadd.f32 %v1699, %v2335
  %v2460 = vadd.f32 %v1702, %v2337
  %v2461 = vadd.f32 %v1705, %v2339
  %v2462 = vadd.f32 %v1708, %v2341
  %v2463 = vadd.f32 %v1711, %v2343
  %v2464 = vadd.f32 %v1714, %v2345
  %v2465 = vadd.f32 %v1717, %v2347
  %v2466 = vadd.f32 %v1720, %v2349
  %v2467 = vadd.f32 %v1723, %v2351
  %v2468 = vadd.f32 %v1726, %v2353
  %v2469 = vadd.f32 %v1729, %v2355
  %v2470 = vadd.f32 %v1732, %v2357
  %v2471 = vadd.f32 %v1735, %v2359
  %v2472 = vadd.f32 %v1738, %v2361
  %v2473 = vadd.f32 %v1741, %v2363
  %v2474 = vadd.f32 %v1744, %v2365
  %v2475 = vadd.f32 %v1747, %v2367
  %v2476 = vadd.f32 %v1750, %v2369
  %v2477 = vadd.f32 %v1753, %v2371
  %v2478 = vadd.f32 %v1756, %v2373
  %v2479 = vadd.f32 %v1759, %v2375
  %v2480 = vadd.f32 %v1762, %v2377
  %v2481 = vadd.f32 %v1765, %v2379
  %v2482 = vadd.f32 %v1768, %v2381
  %v2483 = vadd.f32 %v1771, %v2383
  %v2484 = vadd.f32 %v1774, %v2385
  %v2485 = vadd.f32 %v1777, %v2387
  %v2486 = vadd.f32 %v1780, %v2389
  %v2487 = vadd.f32 %v1783, %v2391
  %v2488 = vadd.f32 %v1786, %v2393
  %v2489 = vadd.f32 %v1789, %v2395
  %v2490 = vadd.f32 %v1792, %v2397
  %v2491 = vadd.f32 %v1795, %v2399
  %v2492 = vadd.f32 %v1798, %v2401
  %v2493 = vadd.f32 %v1801, %v2403
  %v2494 = vadd.f32 %v1804, %v2405
  %v2495 = vadd.f32 %v1807, %v2407
  %v2496 = vadd.f32 %v1810, %v2409
  %v2497 = vadd.f32 %v1813, %v2411
  %v2498 = vadd.f32 %v1816, %v2413
  %v2499 = vadd.f32 %v1819, %v2415
  %v2500 = vadd.f32 %v1822, %v2417
  %v2501 = vadd.f32 %v1825, %v2419
  %v2502 = vadd.f32 %v1828, %v2421
  %v2503 = vadd.f32 %v1831, %v2423
  %v2504 = vadd.f32 %v1834, %v2425
  %v2505 = vadd.f32 %v1837, %v2427
  %v2506 = vadd.f32 %v1840, %v2429
  %v2507 = vadd.f32 %v1843, %v2431
  %v2508 = vadd.f32 %v1846, %v2433
  %v2509 = vadd.f32 %v1849, %v2435
  %v2510 = vadd.f32 %v1852, %v2437
  %v2511 = vadd.f32 %v1855, %v2439
  %v2512 = vadd.f32 %v1858, %v2441
  %v2513 = vadd.f32 %v1861, %v2443
  %v2514 = vadd.f32 %v1864, %v2445
  %v2515 = vadd.f32 %v1867, %v2447
  %v2516 = vadd.f32 %v1870, %v2449
  %v2517 = vadd.f32 %v1873, %v2451
  %v2518 = vadd.f32 %v1876, %v2453
  %v2519 = vadd.f32 %v1879, %v2455
  %v2520 = vsub.f32 %v918, %v2456
  %v2521 = vsub.f32 %v921, %v2457
  %v2522 = vsub.f32 %v926, %v2458
  %v2523 = vsub.f32 %v929, %v2459
  %v2524 = vsub.f32 %v934, %v2460
  %v2525 = vsub.f32 %v937, %v2461
  %v2526 = vsub.f32 %v942, %v2462
  %v2527 = vsub.f32 %v945, %v2463
  %v2528 = vsub.f32 %v950, %v2464
  %v2529 = vsub.f32 %v953, %v2465
  %v2530 = vsub.f32 %v958, %v2466
  %v2531 = vsub.f32 %v961, %v2467
  %v2532 = vsub.f32 %v966, %v2468
  %v2533 = vsub.f32 %v969, %v2469
  %v2534 = vsub.f32 %v974, %v2470
  %v2535 = vsub.f32 %v977, %v2471
  %v2536 = vsub.f32 %v982, %v2472
  %v2537 = vsub.f32 %v985, %v2473
  %v2538 = vsub.f32 %v990, %v2474
  %v2539 = vsub.f32 %v993, %v2475
  %v2540 = vsub.f32 %v998, %v2476
  %v2541 = vsub.f32 %v1001, %v2477
  %v2542 = vsub.f32 %v1006, %v2478
  %v2543 = vsub.f32 %v1009, %v2479
  %v2544 = vsub.f32 %v1014, %v2480
  %v2545 = vsub.f32 %v1017, %v2481
  %v2546 = vsub.f32 %v1022, %v2482
  %v2547 = vsub.f32 %v1025, %v2483
  %v2548 = vsub.f32 %v1030, %v2484
  %v2549 = vsub.f32 %v1033, %v2485
  %v2550 = vsub.f32 %v1038, %v2486
  %v2551 = vsub.f32 %v1041, %v2487
  %v2552 = vsub.f32 %v1046, %v2488
  %v2553 = vsub.f32 %v1049, %v2489
  %v2554 = vsub.f32 %v1054, %v2490
  %v2555 = vsub.f32 %v1057, %v2491
  %v2556 = vsub.f32 %v1062, %v2492
  %v2557 = vsub.f32 %v1065, %v2493
  %v2558 = vsub.f32 %v1070, %v2494
  %v2559 = vsub.f32 %v1073, %v2495
  %v2560 = vsub.f32 %v1078, %v2496
  %v2561 = vsub.f32 %v1081, %v2497
  %v2562 = vsub.f32 %v1086, %v2498
  %v2563 = vsub.f32 %v1089, %v2499
  %v2564 = vsub.f32 %v1094, %v2500
  %v2565 = vsub.f32 %v1097, %v2501
  %v2566 = vsub.f32 %v1102, %v2502
  %v2567 = vsub.f32 %v1105, %v2503
  %v2568 = vsub.f32 %v1110, %v2504
  %v2569 = vsub.f32 %v1113, %v2505
  %v2570 = vsub.f32 %v1118, %v2506
  %v2571 = vsub.f32 %v1121, %v2507
  %v2572 = vsub.f32 %v1126, %v2508
  %v2573 = vsub.f32 %v1129, %v2509
  %v2574 = vsub.f32 %v1134, %v2510
  %v2575 = vsub.f32 %v1137, %v2511
  %v2576 = vsub.f32 %v1142, %v2512
  %v2577 = vsub.f32 %v1145, %v2513
  %v2578 = vsub.f32 %v1150, %v2514
  %v2579 = vsub.f32 %v1153, %v2515
  %v2580 = vsub.f32 %v1158, %v2516
  %v2581 = vsub.f32 %v1161, %v2517
  %v2582 = vsub.f32 %v1166, %v2518
  %v2583 = vsub.f32 %v1169, %v2519
  %s2584 = smul.u32 0, 512
  %v2585 = vlaneseq
  %v2586 = vshrl.u32 %v2585, 7
  %v2587 = vadd.s32 %v2586, 8
  %v2588 = vadd.s32 %v2586, 16
  %v2589 = vadd.s32 %v2586, 24
  %v2590 = vadd.s32 %v2586, 32
  %v2591 = vadd.s32 %v2586, 40
  %v2592 = vadd.s32 %v2586, 48
  %v2593 = vadd.s32 %v2586, 56
  %v2594 = vadd.s32 %v2586, 64
  %v2595 = vadd.s32 %v2586, 72
  %v2596 = vadd.s32 %v2586, 80
  %v2597 = vadd.s32 %v2586, 88
  %v2598 = vadd.s32 %v2586, 96
  %v2599 = vadd.s32 %v2586, 104
  %v2600 = vadd.s32 %v2586, 112
  %v2601 = vadd.s32 %v2586, 120
  %v2602 = vadd.s32 %v2586, 128
  %v2603 = vadd.s32 %v2586, 136
  %v2604 = vadd.s32 %v2586, 144
  %v2605 = vadd.s32 %v2586, 152
  %v2606 = vadd.s32 %v2586, 160
  %v2607 = vadd.s32 %v2586, 168
  %v2608 = vadd.s32 %v2586, 176
  %v2609 = vadd.s32 %v2586, 184
  %v2610 = vadd.s32 %v2586, 192
  %v2611 = vadd.s32 %v2586, 200
  %v2612 = vadd.s32 %v2586, 208
  %v2613 = vadd.s32 %v2586, 216
  %v2614 = vadd.s32 %v2586, 224
  %v2615 = vadd.s32 %v2586, 232
  %v2616 = vadd.s32 %v2586, 240
  %v2617 = vadd.s32 %v2586, 248
  %v2618 = vadd.s32 %v2586, 256
  %v2619 = vadd.s32 %v2586, 264
  %v2620 = vadd.s32 %v2586, 272
  %v2621 = vadd.s32 %v2586, 280
  %v2622 = vadd.s32 %v2586, 288
  %v2623 = vadd.s32 %v2586, 296
  %v2624 = vadd.s32 %v2586, 304
  %v2625 = vadd.s32 %v2586, 312
  %v2626 = vadd.s32 %v2586, 320
  %v2627 = vadd.s32 %v2586, 328
  %v2628 = vadd.s32 %v2586, 336
  %v2629 = vadd.s32 %v2586, 344
  %v2630 = vadd.s32 %v2586, 352
  %v2631 = vadd.s32 %v2586, 360
  %v2632 = vadd.s32 %v2586, 368
  %v2633 = vadd.s32 %v2586, 376
  %v2634 = vadd.s32 %v2586, 384
  %v2635 = vadd.s32 %v2586, 392
  %v2636 = vadd.s32 %v2586, 400
  %v2637 = vadd.s32 %v2586, 408
  %v2638 = vadd.s32 %v2586, 416
  %v2639 = vadd.s32 %v2586, 424
  %v2640 = vadd.s32 %v2586, 432
  %v2641 = vadd.s32 %v2586, 440
  %v2642 = vadd.s32 %v2586, 448
  %v2643 = vadd.s32 %v2586, 456
  %v2644 = vadd.s32 %v2586, 464
  %v2645 = vadd.s32 %v2586, 472
  %v2646 = vadd.s32 %v2586, 480
  %v2647 = vadd.s32 %v2586, 488
  %v2648 = vadd.s32 %v2586, 496
  %v2649 = vadd.s32 %v2586, 504
  %v2650 = vstv %s2584
  %v2651 = vadd.s32 %v2650, %v2586
  %v2652 = vadd.s32 %v2650, %v2587
  %v2653 = vadd.s32 %v2650, %v2588
  %v2654 = vadd.s32 %v2650, %v2589
  %v2655 = vadd.s32 %v2650, %v2590
  %v2656 = vadd.s32 %v2650, %v2591
  %v2657 = vadd.s32 %v2650, %v2592
  %v2658 = vadd.s32 %v2650, %v2593
  %v2659 = vadd.s32 %v2650, %v2594
  %v2660 = vadd.s32 %v2650, %v2595
  %v2661 = vadd.s32 %v2650, %v2596
  %v2662 = vadd.s32 %v2650, %v2597
  %v2663 = vadd.s32 %v2650, %v2598
  %v2664 = vadd.s32 %v2650, %v2599
  %v2665 = vadd.s32 %v2650, %v2600
  %v2666 = vadd.s32 %v2650, %v2601
  %v2667 = vadd.s32 %v2650, %v2602
  %v2668 = vadd.s32 %v2650, %v2603
  %v2669 = vadd.s32 %v2650, %v2604
  %v2670 = vadd.s32 %v2650, %v2605
  %v2671 = vadd.s32 %v2650, %v2606
  %v2672 = vadd.s32 %v2650, %v2607
  %v2673 = vadd.s32 %v2650, %v2608
  %v2674 = vadd.s32 %v2650, %v2609
  %v2675 = vadd.s32 %v2650, %v2610
  %v2676 = vadd.s32 %v2650, %v2611
  %v2677 = vadd.s32 %v2650, %v2612
  %v2678 = vadd.s32 %v2650, %v2613
  %v2679 = vadd.s32 %v2650, %v2614
  %v2680 = vadd.s32 %v2650, %v2615
  %v2681 = vadd.s32 %v2650, %v2616
  %v2682 = vadd.s32 %v2650, %v2617
  %v2683 = vadd.s32 %v2650, %v2618
  %v2684 = vadd.s32 %v2650, %v2619
  %v2685 = vadd.s32 %v2650, %v2620
  %v2686 = vadd.s32 %v2650, %v2621
  %v2687 = vadd.s32 %v2650, %v2622
  %v2688 = vadd.s32 %v2650, %v2623
  %v2689 = vadd.s32 %v2650, %v2624
  %v2690 = vadd.s32 %v2650, %v2625
  %v2691 = vadd.s32 %v2650, %v2626
  %v2692 = vadd.s32 %v2650, %v2627
  %v2693 = vadd.s32 %v2650, %v2628
  %v2694 = vadd.s32 %v2650, %v2629
  %v2695 = vadd.s32 %v2650, %v2630
  %v2696 = vadd.s32 %v2650, %v2631
  %v2697 = vadd.s32 %v2650, %v2632
  %v2698 = vadd.s32 %v2650, %v2633
  %v2699 = vadd.s32 %v2650, %v2634
  %v2700 = vadd.s32 %v2650, %v2635
  %v2701 = vadd.s32 %v2650, %v2636
  %v2702 = vadd.s32 %v2650, %v2637
  %v2703 = vadd.s32 %v2650, %v2638
  %v2704 = vadd.s32 %v2650, %v2639
  %v2705 = vadd.s32 %v2650, %v2640
  %v2706 = vadd.s32 %v2650, %v2641
  %v2707 = vadd.s32 %v2650, %v2642
  %v2708 = vadd.s32 %v2650, %v2643
  %v2709 = vadd.s32 %v2650, %v2644
  %v2710 = vadd.s32 %v2650, %v2645
  %v2711 = vadd.s32 %v2650, %v2646
  %v2712 = vadd.s32 %v2650, %v2647
  %v2713 = vadd.s32 %v2650, %v2648
  %v2714 = vadd.s32 %v2650, %v2649
  %vm2715 = vcmp.lt.s32.totalorder %v2651, 512
  %vm2716 = vcmp.lt.s32.totalorder %v2652, 512
  %vm2717 = vcmp.lt.s32.totalorder %v2653, 512
  %vm2718 = vcmp.lt.s32.totalorder %v2654, 512
  %vm2719 = vcmp.lt.s32.totalorder %v2655, 512
  %vm2720 = vcmp.lt.s32.totalorder %v2656, 512
  %vm2721 = vcmp.lt.s32.totalorder %v2657, 512
  %vm2722 = vcmp.lt.s32.totalorder %v2658, 512
  %vm2723 = vcmp.lt.s32.totalorder %v2659, 512
  %vm2724 = vcmp.lt.s32.totalorder %v2660, 512
  %vm2725 = vcmp.lt.s32.totalorder %v2661, 512
  %vm2726 = vcmp.lt.s32.totalorder %v2662, 512
  %vm2727 = vcmp.lt.s32.totalorder %v2663, 512
  %vm2728 = vcmp.lt.s32.totalorder %v2664, 512
  %vm2729 = vcmp.lt.s32.totalorder %v2665, 512
  %vm2730 = vcmp.lt.s32.totalorder %v2666, 512
  %vm2731 = vcmp.lt.s32.totalorder %v2667, 512
  %vm2732 = vcmp.lt.s32.totalorder %v2668, 512
  %vm2733 = vcmp.lt.s32.totalorder %v2669, 512
  %vm2734 = vcmp.lt.s32.totalorder %v2670, 512
  %vm2735 = vcmp.lt.s32.totalorder %v2671, 512
  %vm2736 = vcmp.lt.s32.totalorder %v2672, 512
  %vm2737 = vcmp.lt.s32.totalorder %v2673, 512
  %vm2738 = vcmp.lt.s32.totalorder %v2674, 512
  %vm2739 = vcmp.lt.s32.totalorder %v2675, 512
  %vm2740 = vcmp.lt.s32.totalorder %v2676, 512
  %vm2741 = vcmp.lt.s32.totalorder %v2677, 512
  %vm2742 = vcmp.lt.s32.totalorder %v2678, 512
  %vm2743 = vcmp.lt.s32.totalorder %v2679, 512
  %vm2744 = vcmp.lt.s32.totalorder %v2680, 512
  %vm2745 = vcmp.lt.s32.totalorder %v2681, 512
  %vm2746 = vcmp.lt.s32.totalorder %v2682, 512
  %vm2747 = vcmp.lt.s32.totalorder %v2683, 512
  %vm2748 = vcmp.lt.s32.totalorder %v2684, 512
  %vm2749 = vcmp.lt.s32.totalorder %v2685, 512
  %vm2750 = vcmp.lt.s32.totalorder %v2686, 512
  %vm2751 = vcmp.lt.s32.totalorder %v2687, 512
  %vm2752 = vcmp.lt.s32.totalorder %v2688, 512
  %vm2753 = vcmp.lt.s32.totalorder %v2689, 512
  %vm2754 = vcmp.lt.s32.totalorder %v2690, 512
  %vm2755 = vcmp.lt.s32.totalorder %v2691, 512
  %vm2756 = vcmp.lt.s32.totalorder %v2692, 512
  %vm2757 = vcmp.lt.s32.totalorder %v2693, 512
  %vm2758 = vcmp.lt.s32.totalorder %v2694, 512
  %vm2759 = vcmp.lt.s32.totalorder %v2695, 512
  %vm2760 = vcmp.lt.s32.totalorder %v2696, 512
  %vm2761 = vcmp.lt.s32.totalorder %v2697, 512
  %vm2762 = vcmp.lt.s32.totalorder %v2698, 512
  %vm2763 = vcmp.lt.s32.totalorder %v2699, 512
  %vm2764 = vcmp.lt.s32.totalorder %v2700, 512
  %vm2765 = vcmp.lt.s32.totalorder %v2701, 512
  %vm2766 = vcmp.lt.s32.totalorder %v2702, 512
  %vm2767 = vcmp.lt.s32.totalorder %v2703, 512
  %vm2768 = vcmp.lt.s32.totalorder %v2704, 512
  %vm2769 = vcmp.lt.s32.totalorder %v2705, 512
  %vm2770 = vcmp.lt.s32.totalorder %v2706, 512
  %vm2771 = vcmp.lt.s32.totalorder %v2707, 512
  %vm2772 = vcmp.lt.s32.totalorder %v2708, 512
  %vm2773 = vcmp.lt.s32.totalorder %v2709, 512
  %vm2774 = vcmp.lt.s32.totalorder %v2710, 512
  %vm2775 = vcmp.lt.s32.totalorder %v2711, 512
  %vm2776 = vcmp.lt.s32.totalorder %v2712, 512
  %vm2777 = vcmp.lt.s32.totalorder %v2713, 512
  %vm2778 = vcmp.lt.s32.totalorder %v2714, 512
  %vm2779 = vmand %vm1560, %vm2715
  %vm2780 = vmand %vm1561, %vm2716
  %vm2781 = vmand %vm1562, %vm2717
  %vm2782 = vmand %vm1563, %vm2718
  %vm2783 = vmand %vm1564, %vm2719
  %vm2784 = vmand %vm1565, %vm2720
  %vm2785 = vmand %vm1566, %vm2721
  %vm2786 = vmand %vm1567, %vm2722
  %vm2787 = vmand %vm1568, %vm2723
  %vm2788 = vmand %vm1569, %vm2724
  %vm2789 = vmand %vm1570, %vm2725
  %vm2790 = vmand %vm1571, %vm2726
  %vm2791 = vmand %vm1572, %vm2727
  %vm2792 = vmand %vm1573, %vm2728
  %vm2793 = vmand %vm1574, %vm2729
  %vm2794 = vmand %vm1575, %vm2730
  %vm2795 = vmand %vm1576, %vm2731
  %vm2796 = vmand %vm1577, %vm2732
  %vm2797 = vmand %vm1578, %vm2733
  %vm2798 = vmand %vm1579, %vm2734
  %vm2799 = vmand %vm1580, %vm2735
  %vm2800 = vmand %vm1581, %vm2736
  %vm2801 = vmand %vm1582, %vm2737
  %vm2802 = vmand %vm1583, %vm2738
  %vm2803 = vmand %vm1584, %vm2739
  %vm2804 = vmand %vm1585, %vm2740
  %vm2805 = vmand %vm1586, %vm2741
  %vm2806 = vmand %vm1587, %vm2742
  %vm2807 = vmand %vm1588, %vm2743
  %vm2808 = vmand %vm1589, %vm2744
  %vm2809 = vmand %vm1590, %vm2745
  %vm2810 = vmand %vm1591, %vm2746
  %vm2811 = vmand %vm1592, %vm2747
  %vm2812 = vmand %vm1593, %vm2748
  %vm2813 = vmand %vm1594, %vm2749
  %vm2814 = vmand %vm1595, %vm2750
  %vm2815 = vmand %vm1596, %vm2751
  %vm2816 = vmand %vm1597, %vm2752
  %vm2817 = vmand %vm1598, %vm2753
  %vm2818 = vmand %vm1599, %vm2754
  %vm2819 = vmand %vm1600, %vm2755
  %vm2820 = vmand %vm1601, %vm2756
  %vm2821 = vmand %vm1602, %vm2757
  %vm2822 = vmand %vm1603, %vm2758
  %vm2823 = vmand %vm1604, %vm2759
  %vm2824 = vmand %vm1605, %vm2760
  %vm2825 = vmand %vm1606, %vm2761
  %vm2826 = vmand %vm1607, %vm2762
  %vm2827 = vmand %vm1608, %vm2763
  %vm2828 = vmand %vm1609, %vm2764
  %vm2829 = vmand %vm1610, %vm2765
  %vm2830 = vmand %vm1611, %vm2766
  %vm2831 = vmand %vm1612, %vm2767
  %vm2832 = vmand %vm1613, %vm2768
  %vm2833 = vmand %vm1614, %vm2769
  %vm2834 = vmand %vm1615, %vm2770
  %vm2835 = vmand %vm1616, %vm2771
  %vm2836 = vmand %vm1617, %vm2772
  %vm2837 = vmand %vm1618, %vm2773
  %vm2838 = vmand %vm1619, %vm2774
  %vm2839 = vmand %vm1620, %vm2775
  %vm2840 = vmand %vm1621, %vm2776
  %vm2841 = vmand %vm1622, %vm2777
  %vm2842 = vmand %vm1623, %vm2778
  %v2843 = vsel %vm2779, %v2520, 0.0
  %v2844 = vsel %vm2780, %v2521, 0.0
  %v2845 = vsel %vm2781, %v2522, 0.0
  %v2846 = vsel %vm2782, %v2523, 0.0
  %v2847 = vsel %vm2783, %v2524, 0.0
  %v2848 = vsel %vm2784, %v2525, 0.0
  %v2849 = vsel %vm2785, %v2526, 0.0
  %v2850 = vsel %vm2786, %v2527, 0.0
  %v2851 = vsel %vm2787, %v2528, 0.0
  %v2852 = vsel %vm2788, %v2529, 0.0
  %v2853 = vsel %vm2789, %v2530, 0.0
  %v2854 = vsel %vm2790, %v2531, 0.0
  %v2855 = vsel %vm2791, %v2532, 0.0
  %v2856 = vsel %vm2792, %v2533, 0.0
  %v2857 = vsel %vm2793, %v2534, 0.0
  %v2858 = vsel %vm2794, %v2535, 0.0
  %v2859 = vsel %vm2795, %v2536, 0.0
  %v2860 = vsel %vm2796, %v2537, 0.0
  %v2861 = vsel %vm2797, %v2538, 0.0
  %v2862 = vsel %vm2798, %v2539, 0.0
  %v2863 = vsel %vm2799, %v2540, 0.0
  %v2864 = vsel %vm2800, %v2541, 0.0
  %v2865 = vsel %vm2801, %v2542, 0.0
  %v2866 = vsel %vm2802, %v2543, 0.0
  %v2867 = vsel %vm2803, %v2544, 0.0
  %v2868 = vsel %vm2804, %v2545, 0.0
  %v2869 = vsel %vm2805, %v2546, 0.0
  %v2870 = vsel %vm2806, %v2547, 0.0
  %v2871 = vsel %vm2807, %v2548, 0.0
  %v2872 = vsel %vm2808, %v2549, 0.0
  %v2873 = vsel %vm2809, %v2550, 0.0
  %v2874 = vsel %vm2810, %v2551, 0.0
  %v2875 = vsel %vm2811, %v2552, 0.0
  %v2876 = vsel %vm2812, %v2553, 0.0
  %v2877 = vsel %vm2813, %v2554, 0.0
  %v2878 = vsel %vm2814, %v2555, 0.0
  %v2879 = vsel %vm2815, %v2556, 0.0
  %v2880 = vsel %vm2816, %v2557, 0.0
  %v2881 = vsel %vm2817, %v2558, 0.0
  %v2882 = vsel %vm2818, %v2559, 0.0
  %v2883 = vsel %vm2819, %v2560, 0.0
  %v2884 = vsel %vm2820, %v2561, 0.0
  %v2885 = vsel %vm2821, %v2562, 0.0
  %v2886 = vsel %vm2822, %v2563, 0.0
  %v2887 = vsel %vm2823, %v2564, 0.0
  %v2888 = vsel %vm2824, %v2565, 0.0
  %v2889 = vsel %vm2825, %v2566, 0.0
  %v2890 = vsel %vm2826, %v2567, 0.0
  %v2891 = vsel %vm2827, %v2568, 0.0
  %v2892 = vsel %vm2828, %v2569, 0.0
  %v2893 = vsel %vm2829, %v2570, 0.0
  %v2894 = vsel %vm2830, %v2571, 0.0
  %v2895 = vsel %vm2831, %v2572, 0.0
  %v2896 = vsel %vm2832, %v2573, 0.0
  %v2897 = vsel %vm2833, %v2574, 0.0
  %v2898 = vsel %vm2834, %v2575, 0.0
  %v2899 = vsel %vm2835, %v2576, 0.0
  %v2900 = vsel %vm2836, %v2577, 0.0
  %v2901 = vsel %vm2837, %v2578, 0.0
  %v2902 = vsel %vm2838, %v2579, 0.0
  %v2903 = vsel %vm2839, %v2580, 0.0
  %v2904 = vsel %vm2840, %v2581, 0.0
  %v2905 = vsel %vm2841, %v2582, 0.0
  %v2906 = vsel %vm2842, %v2583, 0.0
  %v2907 = vsel %vm1172, %v2843, 0.0
  %v2908 = vsel %vm1172, %v2844, 0.0
  %v2909 = vadd.f32 %v2907, %v2908
  %v2910 = vsel %vm1172, %v2845, 0.0
  %v2911 = vadd.f32 %v2909, %v2910
  %v2912 = vsel %vm1172, %v2846, 0.0
  %v2913 = vadd.f32 %v2911, %v2912
  %v2914 = vsel %vm1172, %v2847, 0.0
  %v2915 = vadd.f32 %v2913, %v2914
  %v2916 = vsel %vm1172, %v2848, 0.0
  %v2917 = vadd.f32 %v2915, %v2916
  %v2918 = vsel %vm1172, %v2849, 0.0
  %v2919 = vadd.f32 %v2917, %v2918
  %v2920 = vsel %vm1172, %v2850, 0.0
  %v2921 = vadd.f32 %v2919, %v2920
  %v2922 = vsel %vm1172, %v2851, 0.0
  %v2923 = vadd.f32 %v2921, %v2922
  %v2924 = vsel %vm1172, %v2852, 0.0
  %v2925 = vadd.f32 %v2923, %v2924
  %v2926 = vsel %vm1172, %v2853, 0.0
  %v2927 = vadd.f32 %v2925, %v2926
  %v2928 = vsel %vm1172, %v2854, 0.0
  %v2929 = vadd.f32 %v2927, %v2928
  %v2930 = vsel %vm1172, %v2855, 0.0
  %v2931 = vadd.f32 %v2929, %v2930
  %v2932 = vsel %vm1172, %v2856, 0.0
  %v2933 = vadd.f32 %v2931, %v2932
  %v2934 = vsel %vm1172, %v2857, 0.0
  %v2935 = vadd.f32 %v2933, %v2934
  %v2936 = vsel %vm1172, %v2858, 0.0
  %v2937 = vadd.f32 %v2935, %v2936
  %v2938 = vsel %vm1172, %v2859, 0.0
  %v2939 = vadd.f32 %v2937, %v2938
  %v2940 = vsel %vm1172, %v2860, 0.0
  %v2941 = vadd.f32 %v2939, %v2940
  %v2942 = vsel %vm1172, %v2861, 0.0
  %v2943 = vadd.f32 %v2941, %v2942
  %v2944 = vsel %vm1172, %v2862, 0.0
  %v2945 = vadd.f32 %v2943, %v2944
  %v2946 = vsel %vm1172, %v2863, 0.0
  %v2947 = vadd.f32 %v2945, %v2946
  %v2948 = vsel %vm1172, %v2864, 0.0
  %v2949 = vadd.f32 %v2947, %v2948
  %v2950 = vsel %vm1172, %v2865, 0.0
  %v2951 = vadd.f32 %v2949, %v2950
  %v2952 = vsel %vm1172, %v2866, 0.0
  %v2953 = vadd.f32 %v2951, %v2952
  %v2954 = vsel %vm1172, %v2867, 0.0
  %v2955 = vadd.f32 %v2953, %v2954
  %v2956 = vsel %vm1172, %v2868, 0.0
  %v2957 = vadd.f32 %v2955, %v2956
  %v2958 = vsel %vm1172, %v2869, 0.0
  %v2959 = vadd.f32 %v2957, %v2958
  %v2960 = vsel %vm1172, %v2870, 0.0
  %v2961 = vadd.f32 %v2959, %v2960
  %v2962 = vsel %vm1172, %v2871, 0.0
  %v2963 = vadd.f32 %v2961, %v2962
  %v2964 = vsel %vm1172, %v2872, 0.0
  %v2965 = vadd.f32 %v2963, %v2964
  %v2966 = vsel %vm1172, %v2873, 0.0
  %v2967 = vadd.f32 %v2965, %v2966
  %v2968 = vsel %vm1172, %v2874, 0.0
  %v2969 = vadd.f32 %v2967, %v2968
  %v2970 = vsel %vm1172, %v2875, 0.0
  %v2971 = vadd.f32 %v2969, %v2970
  %v2972 = vsel %vm1172, %v2876, 0.0
  %v2973 = vadd.f32 %v2971, %v2972
  %v2974 = vsel %vm1172, %v2877, 0.0
  %v2975 = vadd.f32 %v2973, %v2974
  %v2976 = vsel %vm1172, %v2878, 0.0
  %v2977 = vadd.f32 %v2975, %v2976
  %v2978 = vsel %vm1172, %v2879, 0.0
  %v2979 = vadd.f32 %v2977, %v2978
  %v2980 = vsel %vm1172, %v2880, 0.0
  %v2981 = vadd.f32 %v2979, %v2980
  %v2982 = vsel %vm1172, %v2881, 0.0
  %v2983 = vadd.f32 %v2981, %v2982
  %v2984 = vsel %vm1172, %v2882, 0.0
  %v2985 = vadd.f32 %v2983, %v2984
  %v2986 = vsel %vm1172, %v2883, 0.0
  %v2987 = vadd.f32 %v2985, %v2986
  %v2988 = vsel %vm1172, %v2884, 0.0
  %v2989 = vadd.f32 %v2987, %v2988
  %v2990 = vsel %vm1172, %v2885, 0.0
  %v2991 = vadd.f32 %v2989, %v2990
  %v2992 = vsel %vm1172, %v2886, 0.0
  %v2993 = vadd.f32 %v2991, %v2992
  %v2994 = vsel %vm1172, %v2887, 0.0
  %v2995 = vadd.f32 %v2993, %v2994
  %v2996 = vsel %vm1172, %v2888, 0.0
  %v2997 = vadd.f32 %v2995, %v2996
  %v2998 = vsel %vm1172, %v2889, 0.0
  %v2999 = vadd.f32 %v2997, %v2998
  %v3000 = vsel %vm1172, %v2890, 0.0
  %v3001 = vadd.f32 %v2999, %v3000
  %v3002 = vsel %vm1172, %v2891, 0.0
  %v3003 = vadd.f32 %v3001, %v3002
  %v3004 = vsel %vm1172, %v2892, 0.0
  %v3005 = vadd.f32 %v3003, %v3004
  %v3006 = vsel %vm1172, %v2893, 0.0
  %v3007 = vadd.f32 %v3005, %v3006
  %v3008 = vsel %vm1172, %v2894, 0.0
  %v3009 = vadd.f32 %v3007, %v3008
  %v3010 = vsel %vm1172, %v2895, 0.0
  %v3011 = vadd.f32 %v3009, %v3010
  %v3012 = vsel %vm1172, %v2896, 0.0
  %v3013 = vadd.f32 %v3011, %v3012
  %v3014 = vsel %vm1172, %v2897, 0.0
  %v3015 = vadd.f32 %v3013, %v3014
  %v3016 = vsel %vm1172, %v2898, 0.0
  %v3017 = vadd.f32 %v3015, %v3016
  %v3018 = vsel %vm1172, %v2899, 0.0
  %v3019 = vadd.f32 %v3017, %v3018
  %v3020 = vsel %vm1172, %v2900, 0.0
  %v3021 = vadd.f32 %v3019, %v3020
  %v3022 = vsel %vm1172, %v2901, 0.0
  %v3023 = vadd.f32 %v3021, %v3022
  %v3024 = vsel %vm1172, %v2902, 0.0
  %v3025 = vadd.f32 %v3023, %v3024
  %v3026 = vsel %vm1172, %v2903, 0.0
  %v3027 = vadd.f32 %v3025, %v3026
  %v3028 = vsel %vm1172, %v2904, 0.0
  %v3029 = vadd.f32 %v3027, %v3028
  %v3030 = vsel %vm1172, %v2905, 0.0
  %v3031 = vadd.f32 %v3029, %v3030
  %v3032 = vsel %vm1172, %v2906, 0.0
  %v3033 = vadd.f32 %v3031, %v3032
  %3034 = vadd.xlane.f32.xlu0 %v3033
  %v3035 = vpop.xlane.xlu0 %3034
  %v3036 = vrot.slane %v3035, 4
  %v3037 = vadd.f32 %v3035, %v3036
  %v3038 = vrot.slane %v3037, 2
  %v3039 = vadd.f32 %v3037, %v3038
  %v3040 = vrot.slane %v3039, 1
  %v3041 = vadd.f32 %v3039, %v3040
  %s3042 = vtos %v3041
  %s3043 = ssub.f32 0.0, %s3042
  %v3044 = vstv %s3043
  %3045 = vst [vmem:[%s7] sm:$0xff] %v3044
  // Predicated region
  $region26: #{coco_detector_forward.1} parent=0 // pred_check
    _
  $region27: #{coco_detector_forward.1} parent=0 // pred_check_branch
    %3047 = sbr.rel (0) target = $region29
  $region28: #{coco_detector_forward.1} parent=0 // pred_region
    _
  $region29: #{coco_detector_forward.1} parent=0 // pred_fallthru
    _
  // Predicated region
  $region30: #{coco_detector_forward.1} parent=0 // pred_check
    _
  $region31: #{coco_detector_forward.1} parent=0 // pred_check_branch
    %3049 = sbr.rel (0) target = $region33
  $region32: #{coco_detector_forward.1} parent=0 // pred_region
    _
  $region33: #{coco_detector_forward.1} parent=0 // pred_fallthru
    _
  // Predicated region
  $region34: #{coco_detector_forward.1} parent=0 // pred_check
    _
  $region35: #{coco_detector_forward.1} parent=0 // pred_check_branch
    %3051 = sbr.rel (0) target = $region37
  $region36: #{coco_detector_forward.1} parent=0 // pred_region
    _
  $region37: #{coco_detector_forward.1} parent=0 // pred_fallthru
    _
  // Predicated region
  $region38: #{coco_detector_forward.1} parent=0 // pred_check
    _
  $region39: #{coco_detector_forward.1} parent=0 // pred_check_branch
    %3053 = sbr.rel (0) target = $region41
  $region40: #{coco_detector_forward.1} parent=0 // pred_region
    _
  $region41: #{coco_detector_forward.1} parent=0 // pred_fallthru
    _

</llo_original>
